<compile_context>
chip_gen: v7x
topology: tpu7x:2x2x1
jax: 0.10.0
libtpu: 0.0.40
codegen_flags: <defaults>
</compile_context>

<pallas_src>
import functools

import jax
import jax.numpy as jnp
from jax import lax
from jax.experimental import pallas as pl
from jax.experimental.pallas import tpu as pltpu


def bilstm_kernel(x_ref, wcat_ref, bcat_ref, whh_ref, wemb_ref, bemb_ref,
                  out_ref, gx_ref, h_ref, *, T, B):
    H2 = whh_ref.shape[0]          # 2H (both directions stacked)
    H = H2 // 2

    # Block-diagonal recurrent weight kept register resident across the short loop.
    whh = whh_ref[...]                                         # (2H, 8H)

    # ---- hoisted input projection: ONE matmul for both directions & all steps ----
    # x_ref is (T*B, 2D) = [x_t | x_{T-1-t}], so the backward half of gx is already
    # time-aligned with step s; no per-step gather, no in-kernel reshape.
    gx_ref[...] = (jnp.dot(x_ref[...], wcat_ref[...],
                           preferred_element_type=jnp.float32)
                   + bcat_ref[...])                            # (T*B, 8H)

    def body(s, carry):
        h_cat, c_cat = carry                                   # (B, 2H) each
        row_f = pl.multiple_of(s * B, B)                       # fwd time t = s
        row_b = pl.multiple_of((T - 1 - s) * B, B)             # bwd time t = T-1-s

        # ONE MXU call + ONE wide cell for BOTH directions (block-diagonal whh).
        gates = gx_ref[pl.ds(row_f, B), :] + jnp.dot(
            h_cat, whh, preferred_element_type=jnp.float32)    # (B, 8H)

        # Merged gate columns [i_f i_b | f_f f_b | o_f o_b | g_f g_b]:
        # sigmoid = one contiguous 6H slice, tanh = one 2H slice (2 EUP pushes).
        sig = jax.nn.sigmoid(gates[:, 0:6 * H])
        g = jnp.tanh(gates[:, 6 * H:8 * H])
        i_cat = sig[:, 0:2 * H]
        f_cat = sig[:, 2 * H:4 * H]
        o_cat = sig[:, 4 * H:6 * H]

        c_new = f_cat * c_cat + i_cat * g                      # 2H-wide elementwise
        h_new = o_cat * jnp.tanh(c_new)

        # Scatter to time-aligned rows of the packed hidden stack. Source and dest
        # lane offsets match (0:H and H:2H) -> mask-only stores, no lane shuffles.
        h_ref[pl.ds(row_f, B), 0:H] = h_new[:, 0:H]            # h_fwd at t = s
        h_ref[pl.ds(row_b, B), H:2 * H] = h_new[:, H:2 * H]    # h_bwd at t = T-1-s
        return h_new, c_new

    h0 = jnp.zeros((B, 2 * H), jnp.float32)
    # Full unroll at small T (LLO sees across iterations); partial unroll if T grows
    # so the register-resident whh_blk + live carries don't spill the 64-vreg file.
    lax.fori_loop(0, T, body, (h0, h0), unroll=True if T <= 16 else 4)

    # ---- output Linear: ONE dot on the packed (T*B, 2H) hidden stack ----
    out_ref[...] = (jnp.dot(h_ref[...], wemb_ref[...],
                            preferred_element_type=jnp.float32)
                    + bemb_ref[...])


def bidirectional_lstm_pallas(x, wih_f, whh_f, b_f, wih_b, whh_b, b_b, wemb, bemb):
    """x: (T, B, D). wih_*: (D, 4H), whh_*: (H, 4H), b_*: (1, 4H) in PyTorch gate
    order (i, f, g, o). wemb: (2H, num_Out), bemb: (1, num_Out)."""
    T, B, D = x.shape
    H = whh_f.shape[0]
    num_out = wemb.shape[1]

    # ---- fill the sublanes: pad batch to a multiple of 8 (zeros), slice back after ----
    Bp = max(8, ((B + 7) // 8) * 8)
    if Bp != B:
        x = jnp.pad(x, ((0, 0), (0, Bp - B), (0, 0)))

    # ---- wrapper-side layout plumbing (free XLA work), kernel stays 100% 2-D ----
    x2 = x.reshape(T * Bp, D)                    # forward time order
    x2_rev = x[::-1].reshape(T * Bp, D)          # time reversed, for the backward dir
    x_aug = jnp.concatenate([x2, x2_rev], axis=1)            # (T*Bp, 2D)

    def split_gates(w):   # PyTorch column order (i, f, g, o) -> (i, f, o, g)
        return w[:, 0:H], w[:, H:2 * H], w[:, 3 * H:4 * H], w[:, 2 * H:3 * H]

    def merge_block_diag(wf, wb):
        # -> [[gates_f, 0], [0, gates_b]] with merged column order
        #    [i_f i_b | f_f f_b | o_f o_b | g_f g_b]
        i_f, f_f, o_f, g_f = split_gates(wf)
        i_b, f_b, o_b, g_b = split_gates(wb)
        zf = jnp.zeros((wf.shape[0], H), jnp.float32)
        zb = jnp.zeros((wb.shape[0], H), jnp.float32)
        top = jnp.concatenate([i_f, zf, f_f, zf, o_f, zf, g_f, zf], axis=1)
        bot = jnp.concatenate([zb, i_b, zb, f_b, zb, o_b, zb, g_b], axis=1)
        return jnp.concatenate([top, bot], axis=0)

    wcat = merge_block_diag(wih_f, wih_b)        # (2D, 8H)
    whh_blk = merge_block_diag(whh_f, whh_b)     # (2H, 8H)

    bi_f, bf_f, bo_f, bg_f = split_gates(b_f)
    bi_b, bf_b, bo_b, bg_b = split_gates(b_b)
    bcat = jnp.concatenate([bi_f, bi_b, bf_f, bf_b, bo_f, bo_b, bg_f, bg_b],
                           axis=1)               # (1, 8H)

    vmem = pl.BlockSpec(memory_space=pltpu.MemorySpace.VMEM)
    kernel = functools.partial(bilstm_kernel, T=T, B=Bp)

    # TODO(synk): for long T on v7x (64 MiB VMEM) tile T with a grid and stream the
    # precomputed gx blocks (pl.Buffered) instead of keeping them resident; and once
    # several independent sequences are batched, add a leading "parallel" grid axis
    # so v7x's second TensorCore gets used.
    out = pl.pallas_call(
        kernel,
        out_shape=jax.ShapeDtypeStruct((T * Bp, num_out), jnp.float32),
        in_specs=[vmem] * 6,
        out_specs=vmem,
        scratch_shapes=[
            pltpu.VMEM((T * Bp, 8 * H), jnp.float32),  # precomputed input gates, both dirs
            pltpu.VMEM((T * Bp, 2 * H), jnp.float32),  # packed [h_fwd | h_bwd] stack
        ],
        compiler_params=pltpu.CompilerParams(vmem_limit_bytes=32 * 1024 * 1024),
    )(x_aug, wcat, bcat, whh_blk, wemb, bemb)

    # Wrapper-side reshape + un-pad (free layout plumbing).
    return out.reshape(T, Bp, num_out)[:, :B, :]


# ----------------- pure-JAX reference (for correctness check) -----------------
def ref_forward(x, wih_f, whh_f, b_f, wih_b, whh_b, b_b, wemb, bemb):
    T, B, _ = x.shape
    H = whh_f.shape[0]

    def run_dir(xs, wih, whh, b):
        def f(carry, x_t):
            h, c = carry
            gates = x_t @ wih + h @ whh + b
            i = jax.nn.sigmoid(gates[:, 0:H])
            fg = jax.nn.sigmoid(gates[:, H:2 * H])
            g = jnp.tanh(gates[:, 2 * H:3 * H])
            o = jax.nn.sigmoid(gates[:, 3 * H:4 * H])
            c_new = fg * c + i * g
            h_new = o * jnp.tanh(c_new)
            return (h_new, c_new), h_new

        h0 = jnp.zeros((B, H), jnp.float32)
        c0 = jnp.zeros((B, H), jnp.float32)
        _, hs = lax.scan(f, (h0, c0), xs)
        return hs

    h_fwd = run_dir(x, wih_f, whh_f, b_f)
    h_bwd = run_dir(x[::-1], wih_b, whh_b, b_b)[::-1]
    lstm_out = jnp.concatenate([h_fwd, h_bwd], axis=-1)
    out = lstm_out.reshape(T * B, 2 * H) @ wemb + bemb
    return out.reshape(T, B, -1)


if __name__ == "__main__":
    T, B = 8, 2            # seq_len, batch
    num_in, num_hidden, num_out = 16, 32, 16

    key = jax.random.PRNGKey(0)
    ks = jax.random.split(key, 12)
    s = 1.0 / jnp.sqrt(num_hidden)

    def u(k, shape):
        return jax.random.uniform(k, shape, jnp.float32, -s, s)

    x = jax.random.normal(ks[0], (T, B, num_in), jnp.float32)

    # PyTorch layouts: weight_ih (4H, D), weight_hh (4H, H), biases (4H,).
    # Pre-transpose for the kernel; fold bias_ih + bias_hh into one row vector.
    wih_f = u(ks[1], (4 * num_hidden, num_in)).T          # (D, 4H)
    whh_f = u(ks[2], (4 * num_hidden, num_hidden)).T      # (H, 4H)
    b_f = (u(ks[3], (4 * num_hidden,)) + u(ks[4], (4 * num_hidden,))).reshape(1, -1)
    wih_b = u(ks[5], (4 * num_hidden, num_in)).T
    whh_b = u(ks[6], (4 * num_hidden, num_hidden)).T
    b_b = (u(ks[7], (4 * num_hidden,)) + u(ks[8], (4 * num_hidden,))).reshape(1, -1)

    se = 1.0 / jnp.sqrt(2.0 * num_hidden)
    wemb = jax.random.uniform(ks[9], (num_out, 2 * num_hidden), jnp.float32, -se, se).T  # (2H, num_Out)
    bemb = jax.random.uniform(ks[10], (num_out,), jnp.float32, -se, se).reshape(1, -1)

    out = bidirectional_lstm_pallas(x, wih_f, whh_f, b_f, wih_b, whh_b, b_b, wemb, bemb)
    out = jax.block_until_ready(out)

    ref = ref_forward(x, wih_f, whh_f, b_f, wih_b, whh_b, b_b, wemb, bemb)
    assert out.shape == (T, B, num_out)
    assert jnp.allclose(out, ref, rtol=1e-4, atol=1e-4), "mismatch vs reference"

    print("KERNEL_OK")
</pallas_src>

<mosaic_0001>
module attributes {stable_mosaic.version = 11 : i64} {
  func.func @bilstm_kernel(%arg0: memref<64x32xf32, #tpu.memory_space<vmem>>, %arg1: memref<32x256xf32, #tpu.memory_space<vmem>>, %arg2: memref<1x256xf32, #tpu.memory_space<vmem>>, %arg3: memref<64x256xf32, #tpu.memory_space<vmem>>, %arg4: memref<64x16xf32, #tpu.memory_space<vmem>>, %arg5: memref<1x16xf32, #tpu.memory_space<vmem>>, %arg6: memref<64x16xf32, #tpu.memory_space<vmem>>, %arg7: memref<64x256xf32, #tpu.memory_space<vmem>>, %arg8: memref<64x64xf32, #tpu.memory_space<vmem>>) attributes {dimension_semantics = [], scalar_prefetch = 0 : i64, scratch_operands = 2 : i64, tpu.core_type = #tpu.core_type<tc>} {
    %c0 = arith.constant 0 : index
    %c0_0 = arith.constant 0 : index
    %0 = vector.load %arg3[%c0, %c0_0] : memref<64x256xf32, #tpu.memory_space<vmem>>, vector<64x256xf32>
    %c0_1 = arith.constant 0 : index
    %c0_2 = arith.constant 0 : index
    %1 = vector.load %arg0[%c0_1, %c0_2] : memref<64x32xf32, #tpu.memory_space<vmem>>, vector<64x32xf32>
    %c0_3 = arith.constant 0 : index
    %c0_4 = arith.constant 0 : index
    %2 = vector.load %arg1[%c0_3, %c0_4] : memref<32x256xf32, #tpu.memory_space<vmem>>, vector<32x256xf32>
    %cst = arith.constant dense<0.000000e+00> : vector<64x256xf32>
    %3 = tpu.matmul %1, %2, %cst {dimension_numbers = #tpu.dot_dimension_numbers<[1], [0], [0], [1], [0, 0, 1, 1], [], []>} : vector<64x32xf32>, vector<32x256xf32>, vector<64x256xf32> -> vector<64x256xf32>
    %c0_5 = arith.constant 0 : index
    %c0_6 = arith.constant 0 : index
    %4 = vector.load %arg2[%c0_5, %c0_6] : memref<1x256xf32, #tpu.memory_space<vmem>>, vector<1x256xf32>
    %5 = vector.broadcast %4 : vector<1x256xf32> to vector<64x256xf32>
    %6 = arith.addf %3, %5 : vector<64x256xf32>
    %c0_7 = arith.constant 0 : index
    %c0_8 = arith.constant 0 : index
    %7 = vector.load %arg7[%c0_7, %c0_8] : memref<64x256xf32, #tpu.memory_space<vmem>>, vector<64x256xf32>
    tpu.vector_store %arg7[%c0_7, %c0_8], %6 {strides = array<i32>} : memref<64x256xf32, #tpu.memory_space<vmem>>, vector<64x256xf32>,
    %cst_9 = arith.constant 0.000000e+00 : f32
    %8 = vector.broadcast %cst_9 : f32 to vector<8x64xf32>
    %c0_i32 = arith.constant 0 : i32
    %c8_i32 = arith.constant 8 : i32
    %9 = arith.muli %c0_i32, %c8_i32 : i32
    %10 = tpu.assume_multiple %9, 8 : i32
    %c7_i32 = arith.constant 7 : i32
    %11 = arith.subi %c7_i32, %c0_i32 : i32
    %c8_i32_10 = arith.constant 8 : i32
    %12 = arith.muli %11, %c8_i32_10 : i32
    %13 = tpu.assume_multiple %12, 8 : i32
    %14 = arith.index_cast %10 : i32 to index
    %c0_11 = arith.constant 0 : index
    %15 = vector.load %arg7[%14, %c0_11] : memref<64x256xf32, #tpu.memory_space<vmem>>, vector<8x256xf32>
    %cst_12 = arith.constant dense<0.000000e+00> : vector<8x256xf32>
    %16 = tpu.matmul %8, %0, %cst_12 {dimension_numbers = #tpu.dot_dimension_numbers<[1], [0], [0], [1], [0, 0, 1, 1], [], []>} : vector<8x64xf32>, vector<64x256xf32>, vector<8x256xf32> -> vector<8x256xf32>
    %17 = arith.addf %15, %16 : vector<8x256xf32>
    %18 = vector.extract_strided_slice %17 {offsets = [0, 0], sizes = [8, 192], strides = [1, 1]} : vector<8x256xf32> to vector<8x192xf32>
    %19 = arith.negf %18 : vector<8x192xf32>
    %20 = math.exp %19 : vector<8x192xf32>
    %cst_13 = arith.constant 1.000000e+00 : f32
    %21 = vector.broadcast %cst_13 : f32 to vector<8x192xf32>
    %22 = arith.addf %21, %20 : vector<8x192xf32>
    %23 = arith.divf %21, %22 : vector<8x192xf32>
    %24 = vector.extract_strided_slice %17 {offsets = [0, 192], sizes = [8, 64], strides = [1, 1]} : vector<8x256xf32> to vector<8x64xf32>
    %25 = math.tanh %24 : vector<8x64xf32>
    %26 = vector.extract_strided_slice %23 {offsets = [0, 0], sizes = [8, 64], strides = [1, 1]} : vector<8x192xf32> to vector<8x64xf32>
    %27 = vector.extract_strided_slice %23 {offsets = [0, 64], sizes = [8, 64], strides = [1, 1]} : vector<8x192xf32> to vector<8x64xf32>
    %28 = vector.extract_strided_slice %23 {offsets = [0, 128], sizes = [8, 64], strides = [1, 1]} : vector<8x192xf32> to vector<8x64xf32>
    %29 = arith.mulf %27, %8 : vector<8x64xf32>
    %30 = arith.mulf %26, %25 : vector<8x64xf32>
    %31 = arith.addf %29, %30 : vector<8x64xf32>
    %32 = math.tanh %31 : vector<8x64xf32>
    %33 = arith.mulf %28, %32 : vector<8x64xf32>
    %34 = vector.extract_strided_slice %33 {offsets = [0, 0], sizes = [8, 32], strides = [1, 1]} : vector<8x64xf32> to vector<8x32xf32>
    %35 = arith.index_cast %10 : i32 to index
    %c0_14 = arith.constant 0 : index
    %36 = vector.load %arg8[%35, %c0_14] : memref<64x64xf32, #tpu.memory_space<vmem>>, vector<8x32xf32>
    tpu.vector_store %arg8[%35, %c0_14], %34 {strides = array<i32>} : memref<64x64xf32, #tpu.memory_space<vmem>>, vector<8x32xf32>,
    %37 = vector.extract_strided_slice %33 {offsets = [0, 32], sizes = [8, 32], strides = [1, 1]} : vector<8x64xf32> to vector<8x32xf32>
    %38 = arith.index_cast %13 : i32 to index
    %c32 = arith.constant 32 : index
    %39 = vector.load %arg8[%38, %c32] : memref<64x64xf32, #tpu.memory_space<vmem>>, vector<8x32xf32>
    tpu.vector_store %arg8[%38, %c32], %37 {strides = array<i32>} : memref<64x64xf32, #tpu.memory_space<vmem>>, vector<8x32xf32>,
    %c1_i32 = arith.constant 1 : i32
    %c8_i32_15 = arith.constant 8 : i32
    %40 = arith.muli %c1_i32, %c8_i32_15 : i32
    %41 = tpu.assume_multiple %40, 8 : i32
    %c7_i32_16 = arith.constant 7 : i32
    %42 = arith.subi %c7_i32_16, %c1_i32 : i32
    %c8_i32_17 = arith.constant 8 : i32
    %43 = arith.muli %42, %c8_i32_17 : i32
    %44 = tpu.assume_multiple %43, 8 : i32
    %45 = arith.index_cast %41 : i32 to index
    %c0_18 = arith.constant 0 : index
    %46 = vector.load %arg7[%45, %c0_18] : memref<64x256xf32, #tpu.memory_space<vmem>>, vector<8x256xf32>
    %cst_19 = arith.constant dense<0.000000e+00> : vector<8x256xf32>
    %47 = tpu.matmul %33, %0, %cst_19 {dimension_numbers = #tpu.dot_dimension_numbers<[1], [0], [0], [1], [0, 0, 1, 1], [], []>} : vector<8x64xf32>, vector<64x256xf32>, vector<8x256xf32> -> vector<8x256xf32>
    %48 = arith.addf %46, %47 : vector<8x256xf32>
    %49 = vector.extract_strided_slice %48 {offsets = [0, 0], sizes = [8, 192], strides = [1, 1]} : vector<8x256xf32> to vector<8x192xf32>
    %50 = arith.negf %49 : vector<8x192xf32>
    %51 = math.exp %50 : vector<8x192xf32>
    %cst_20 = arith.constant 1.000000e+00 : f32
    %52 = vector.broadcast %cst_20 : f32 to vector<8x192xf32>
    %53 = arith.addf %52, %51 : vector<8x192xf32>
    %54 = arith.divf %52, %53 : vector<8x192xf32>
    %55 = vector.extract_strided_slice %48 {offsets = [0, 192], sizes = [8, 64], strides = [1, 1]} : vector<8x256xf32> to vector<8x64xf32>
    %56 = math.tanh %55 : vector<8x64xf32>
    %57 = vector.extract_strided_slice %54 {offsets = [0, 0], sizes = [8, 64], strides = [1, 1]} : vector<8x192xf32> to vector<8x64xf32>
    %58 = vector.extract_strided_slice %54 {offsets = [0, 64], sizes = [8, 64], strides = [1, 1]} : vector<8x192xf32> to vector<8x64xf32>
    %59 = vector.extract_strided_slice %54 {offsets = [0, 128], sizes = [8, 64], strides = [1, 1]} : vector<8x192xf32> to vector<8x64xf32>
    %60 = arith.mulf %58, %31 : vector<8x64xf32>
    %61 = arith.mulf %57, %56 : vector<8x64xf32>
    %62 = arith.addf %60, %61 : vector<8x64xf32>
    %63 = math.tanh %62 : vector<8x64xf32>
    %64 = arith.mulf %59, %63 : vector<8x64xf32>
    %65 = vector.extract_strided_slice %64 {offsets = [0, 0], sizes = [8, 32], strides = [1, 1]} : vector<8x64xf32> to vector<8x32xf32>
    %66 = arith.index_cast %41 : i32 to index
    %c0_21 = arith.constant 0 : index
    %67 = vector.load %arg8[%66, %c0_21] : memref<64x64xf32, #tpu.memory_space<vmem>>, vector<8x32xf32>
    tpu.vector_store %arg8[%66, %c0_21], %65 {strides = array<i32>} : memref<64x64xf32, #tpu.memory_space<vmem>>, vector<8x32xf32>,
    %68 = vector.extract_strided_slice %64 {offsets = [0, 32], sizes = [8, 32], strides = [1, 1]} : vector<8x64xf32> to vector<8x32xf32>
    %69 = arith.index_cast %44 : i32 to index
    %c32_22 = arith.constant 32 : index
    %70 = vector.load %arg8[%69, %c32_22] : memref<64x64xf32, #tpu.memory_space<vmem>>, vector<8x32xf32>
    tpu.vector_store %arg8[%69, %c32_22], %68 {strides = array<i32>} : memref<64x64xf32, #tpu.memory_space<vmem>>, vector<8x32xf32>,
    %c2_i32 = arith.constant 2 : i32
    %c8_i32_23 = arith.constant 8 : i32
    %71 = arith.muli %c2_i32, %c8_i32_23 : i32
    %72 = tpu.assume_multiple %71, 8 : i32
    %c7_i32_24 = arith.constant 7 : i32
    %73 = arith.subi %c7_i32_24, %c2_i32 : i32
    %c8_i32_25 = arith.constant 8 : i32
    %74 = arith.muli %73, %c8_i32_25 : i32
    %75 = tpu.assume_multiple %74, 8 : i32
    %76 = arith.index_cast %72 : i32 to index
    %c0_26 = arith.constant 0 : index
    %77 = vector.load %arg7[%76, %c0_26] : memref<64x256xf32, #tpu.memory_space<vmem>>, vector<8x256xf32>
    %cst_27 = arith.constant dense<0.000000e+00> : vector<8x256xf32>
    %78 = tpu.matmul %64, %0, %cst_27 {dimension_numbers = #tpu.dot_dimension_numbers<[1], [0], [0], [1], [0, 0, 1, 1], [], []>} : vector<8x64xf32>, vector<64x256xf32>, vector<8x256xf32> -> vector<8x256xf32>
    %79 = arith.addf %77, %78 : vector<8x256xf32>
    %80 = vector.extract_strided_slice %79 {offsets = [0, 0], sizes = [8, 192], strides = [1, 1]} : vector<8x256xf32> to vector<8x192xf32>
    %81 = arith.negf %80 : vector<8x192xf32>
    %82 = math.exp %81 : vector<8x192xf32>
    %cst_28 = arith.constant 1.000000e+00 : f32
    %83 = vector.broadcast %cst_28 : f32 to vector<8x192xf32>
    %84 = arith.addf %83, %82 : vector<8x192xf32>
    %85 = arith.divf %83, %84 : vector<8x192xf32>
    %86 = vector.extract_strided_slice %79 {offsets = [0, 192], sizes = [8, 64], strides = [1, 1]} : vector<8x256xf32> to vector<8x64xf32>
    %87 = math.tanh %86 : vector<8x64xf32>
    %88 = vector.extract_strided_slice %85 {offsets = [0, 0], sizes = [8, 64], strides = [1, 1]} : vector<8x192xf32> to vector<8x64xf32>
    %89 = vector.extract_strided_slice %85 {offsets = [0, 64], sizes = [8, 64], strides = [1, 1]} : vector<8x192xf32> to vector<8x64xf32>
    %90 = vector.extract_strided_slice %85 {offsets = [0, 128], sizes = [8, 64], strides = [1, 1]} : vector<8x192xf32> to vector<8x64xf32>
    %91 = arith.mulf %89, %62 : vector<8x64xf32>
    %92 = arith.mulf %88, %87 : vector<8x64xf32>
    %93 = arith.addf %91, %92 : vector<8x64xf32>
    %94 = math.tanh %93 : vector<8x64xf32>
    %95 = arith.mulf %90, %94 : vector<8x64xf32>
    %96 = vector.extract_strided_slice %95 {offsets = [0, 0], sizes = [8, 32], strides = [1, 1]} : vector<8x64xf32> to vector<8x32xf32>
    %97 = arith.index_cast %72 : i32 to index
    %c0_29 = arith.constant 0 : index
    %98 = vector.load %arg8[%97, %c0_29] : memref<64x64xf32, #tpu.memory_space<vmem>>, vector<8x32xf32>
    tpu.vector_store %arg8[%97, %c0_29], %96 {strides = array<i32>} : memref<64x64xf32, #tpu.memory_space<vmem>>, vector<8x32xf32>,
    %99 = vector.extract_strided_slice %95 {offsets = [0, 32], sizes = [8, 32], strides = [1, 1]} : vector<8x64xf32> to vector<8x32xf32>
    %100 = arith.index_cast %75 : i32 to index
    %c32_30 = arith.constant 32 : index
    %101 = vector.load %arg8[%100, %c32_30] : memref<64x64xf32, #tpu.memory_space<vmem>>, vector<8x32xf32>
    tpu.vector_store %arg8[%100, %c32_30], %99 {strides = array<i32>} : memref<64x64xf32, #tpu.memory_space<vmem>>, vector<8x32xf32>,
    %c3_i32 = arith.constant 3 : i32
    %c8_i32_31 = arith.constant 8 : i32
    %102 = arith.muli %c3_i32, %c8_i32_31 : i32
    %103 = tpu.assume_multiple %102, 8 : i32
    %c7_i32_32 = arith.constant 7 : i32
    %104 = arith.subi %c7_i32_32, %c3_i32 : i32
    %c8_i32_33 = arith.constant 8 : i32
    %105 = arith.muli %104, %c8_i32_33 : i32
    %106 = tpu.assume_multiple %105, 8 : i32
    %107 = arith.index_cast %103 : i32 to index
    %c0_34 = arith.constant 0 : index
    %108 = vector.load %arg7[%107, %c0_34] : memref<64x256xf32, #tpu.memory_space<vmem>>, vector<8x256xf32>
    %cst_35 = arith.constant dense<0.000000e+00> : vector<8x256xf32>
    %109 = tpu.matmul %95, %0, %cst_35 {dimension_numbers = #tpu.dot_dimension_numbers<[1], [0], [0], [1], [0, 0, 1, 1], [], []>} : vector<8x64xf32>, vector<64x256xf32>, vector<8x256xf32> -> vector<8x256xf32>
    %110 = arith.addf %108, %109 : vector<8x256xf32>
    %111 = vector.extract_strided_slice %110 {offsets = [0, 0], sizes = [8, 192], strides = [1, 1]} : vector<8x256xf32> to vector<8x192xf32>
    %112 = arith.negf %111 : vector<8x192xf32>
    %113 = math.exp %112 : vector<8x192xf32>
    %cst_36 = arith.constant 1.000000e+00 : f32
    %114 = vector.broadcast %cst_36 : f32 to vector<8x192xf32>
    %115 = arith.addf %114, %113 : vector<8x192xf32>
    %116 = arith.divf %114, %115 : vector<8x192xf32>
    %117 = vector.extract_strided_slice %110 {offsets = [0, 192], sizes = [8, 64], strides = [1, 1]} : vector<8x256xf32> to vector<8x64xf32>
    %118 = math.tanh %117 : vector<8x64xf32>
    %119 = vector.extract_strided_slice %116 {offsets = [0, 0], sizes = [8, 64], strides = [1, 1]} : vector<8x192xf32> to vector<8x64xf32>
    %120 = vector.extract_strided_slice %116 {offsets = [0, 64], sizes = [8, 64], strides = [1, 1]} : vector<8x192xf32> to vector<8x64xf32>
    %121 = vector.extract_strided_slice %116 {offsets = [0, 128], sizes = [8, 64], strides = [1, 1]} : vector<8x192xf32> to vector<8x64xf32>
    %122 = arith.mulf %120, %93 : vector<8x64xf32>
    %123 = arith.mulf %119, %118 : vector<8x64xf32>
    %124 = arith.addf %122, %123 : vector<8x64xf32>
    %125 = math.tanh %124 : vector<8x64xf32>
    %126 = arith.mulf %121, %125 : vector<8x64xf32>
    %127 = vector.extract_strided_slice %126 {offsets = [0, 0], sizes = [8, 32], strides = [1, 1]} : vector<8x64xf32> to vector<8x32xf32>
    %128 = arith.index_cast %103 : i32 to index
    %c0_37 = arith.constant 0 : index
    %129 = vector.load %arg8[%128, %c0_37] : memref<64x64xf32, #tpu.memory_space<vmem>>, vector<8x32xf32>
    tpu.vector_store %arg8[%128, %c0_37], %127 {strides = array<i32>} : memref<64x64xf32, #tpu.memory_space<vmem>>, vector<8x32xf32>,
    %130 = vector.extract_strided_slice %126 {offsets = [0, 32], sizes = [8, 32], strides = [1, 1]} : vector<8x64xf32> to vector<8x32xf32>
    %131 = arith.index_cast %106 : i32 to index
    %c32_38 = arith.constant 32 : index
    %132 = vector.load %arg8[%131, %c32_38] : memref<64x64xf32, #tpu.memory_space<vmem>>, vector<8x32xf32>
    tpu.vector_store %arg8[%131, %c32_38], %130 {strides = array<i32>} : memref<64x64xf32, #tpu.memory_space<vmem>>, vector<8x32xf32>,
    %c4_i32 = arith.constant 4 : i32
    %c8_i32_39 = arith.constant 8 : i32
    %133 = arith.muli %c4_i32, %c8_i32_39 : i32
    %134 = tpu.assume_multiple %133, 8 : i32
    %c7_i32_40 = arith.constant 7 : i32
    %135 = arith.subi %c7_i32_40, %c4_i32 : i32
    %c8_i32_41 = arith.constant 8 : i32
    %136 = arith.muli %135, %c8_i32_41 : i32
    %137 = tpu.assume_multiple %136, 8 : i32
    %138 = arith.index_cast %134 : i32 to index
    %c0_42 = arith.constant 0 : index
    %139 = vector.load %arg7[%138, %c0_42] : memref<64x256xf32, #tpu.memory_space<vmem>>, vector<8x256xf32>
    %cst_43 = arith.constant dense<0.000000e+00> : vector<8x256xf32>
    %140 = tpu.matmul %126, %0, %cst_43 {dimension_numbers = #tpu.dot_dimension_numbers<[1], [0], [0], [1], [0, 0, 1, 1], [], []>} : vector<8x64xf32>, vector<64x256xf32>, vector<8x256xf32> -> vector<8x256xf32>
    %141 = arith.addf %139, %140 : vector<8x256xf32>
    %142 = vector.extract_strided_slice %141 {offsets = [0, 0], sizes = [8, 192], strides = [1, 1]} : vector<8x256xf32> to vector<8x192xf32>
    %143 = arith.negf %142 : vector<8x192xf32>
    %144 = math.exp %143 : vector<8x192xf32>
    %cst_44 = arith.constant 1.000000e+00 : f32
    %145 = vector.broadcast %cst_44 : f32 to vector<8x192xf32>
    %146 = arith.addf %145, %144 : vector<8x192xf32>
    %147 = arith.divf %145, %146 : vector<8x192xf32>
    %148 = vector.extract_strided_slice %141 {offsets = [0, 192], sizes = [8, 64], strides = [1, 1]} : vector<8x256xf32> to vector<8x64xf32>
    %149 = math.tanh %148 : vector<8x64xf32>
    %150 = vector.extract_strided_slice %147 {offsets = [0, 0], sizes = [8, 64], strides = [1, 1]} : vector<8x192xf32> to vector<8x64xf32>
    %151 = vector.extract_strided_slice %147 {offsets = [0, 64], sizes = [8, 64], strides = [1, 1]} : vector<8x192xf32> to vector<8x64xf32>
    %152 = vector.extract_strided_slice %147 {offsets = [0, 128], sizes = [8, 64], strides = [1, 1]} : vector<8x192xf32> to vector<8x64xf32>
    %153 = arith.mulf %151, %124 : vector<8x64xf32>
    %154 = arith.mulf %150, %149 : vector<8x64xf32>
    %155 = arith.addf %153, %154 : vector<8x64xf32>
    %156 = math.tanh %155 : vector<8x64xf32>
    %157 = arith.mulf %152, %156 : vector<8x64xf32>
    %158 = vector.extract_strided_slice %157 {offsets = [0, 0], sizes = [8, 32], strides = [1, 1]} : vector<8x64xf32> to vector<8x32xf32>
    %159 = arith.index_cast %134 : i32 to index
    %c0_45 = arith.constant 0 : index
    %160 = vector.load %arg8[%159, %c0_45] : memref<64x64xf32, #tpu.memory_space<vmem>>, vector<8x32xf32>
    tpu.vector_store %arg8[%159, %c0_45], %158 {strides = array<i32>} : memref<64x64xf32, #tpu.memory_space<vmem>>, vector<8x32xf32>,
    %161 = vector.extract_strided_slice %157 {offsets = [0, 32], sizes = [8, 32], strides = [1, 1]} : vector<8x64xf32> to vector<8x32xf32>
    %162 = arith.index_cast %137 : i32 to index
    %c32_46 = arith.constant 32 : index
    %163 = vector.load %arg8[%162, %c32_46] : memref<64x64xf32, #tpu.memory_space<vmem>>, vector<8x32xf32>
    tpu.vector_store %arg8[%162, %c32_46], %161 {strides = array<i32>} : memref<64x64xf32, #tpu.memory_space<vmem>>, vector<8x32xf32>,
    %c5_i32 = arith.constant 5 : i32
    %c8_i32_47 = arith.constant 8 : i32
    %164 = arith.muli %c5_i32, %c8_i32_47 : i32
    %165 = tpu.assume_multiple %164, 8 : i32
    %c7_i32_48 = arith.constant 7 : i32
    %166 = arith.subi %c7_i32_48, %c5_i32 : i32
    %c8_i32_49 = arith.constant 8 : i32
    %167 = arith.muli %166, %c8_i32_49 : i32
    %168 = tpu.assume_multiple %167, 8 : i32
    %169 = arith.index_cast %165 : i32 to index
    %c0_50 = arith.constant 0 : index
    %170 = vector.load %arg7[%169, %c0_50] : memref<64x256xf32, #tpu.memory_space<vmem>>, vector<8x256xf32>
    %cst_51 = arith.constant dense<0.000000e+00> : vector<8x256xf32>
    %171 = tpu.matmul %157, %0, %cst_51 {dimension_numbers = #tpu.dot_dimension_numbers<[1], [0], [0], [1], [0, 0, 1, 1], [], []>} : vector<8x64xf32>, vector<64x256xf32>, vector<8x256xf32> -> vector<8x256xf32>
    %172 = arith.addf %170, %171 : vector<8x256xf32>
    %173 = vector.extract_strided_slice %172 {offsets = [0, 0], sizes = [8, 192], strides = [1, 1]} : vector<8x256xf32> to vector<8x192xf32>
    %174 = arith.negf %173 : vector<8x192xf32>
    %175 = math.exp %174 : vector<8x192xf32>
    %cst_52 = arith.constant 1.000000e+00 : f32
    %176 = vector.broadcast %cst_52 : f32 to vector<8x192xf32>
    %177 = arith.addf %176, %175 : vector<8x192xf32>
    %178 = arith.divf %176, %177 : vector<8x192xf32>
    %179 = vector.extract_strided_slice %172 {offsets = [0, 192], sizes = [8, 64], strides = [1, 1]} : vector<8x256xf32> to vector<8x64xf32>
    %180 = math.tanh %179 : vector<8x64xf32>
    %181 = vector.extract_strided_slice %178 {offsets = [0, 0], sizes = [8, 64], strides = [1, 1]} : vector<8x192xf32> to vector<8x64xf32>
    %182 = vector.extract_strided_slice %178 {offsets = [0, 64], sizes = [8, 64], strides = [1, 1]} : vector<8x192xf32> to vector<8x64xf32>
    %183 = vector.extract_strided_slice %178 {offsets = [0, 128], sizes = [8, 64], strides = [1, 1]} : vector<8x192xf32> to vector<8x64xf32>
    %184 = arith.mulf %182, %155 : vector<8x64xf32>
    %185 = arith.mulf %181, %180 : vector<8x64xf32>
    %186 = arith.addf %184, %185 : vector<8x64xf32>
    %187 = math.tanh %186 : vector<8x64xf32>
    %188 = arith.mulf %183, %187 : vector<8x64xf32>
    %189 = vector.extract_strided_slice %188 {offsets = [0, 0], sizes = [8, 32], strides = [1, 1]} : vector<8x64xf32> to vector<8x32xf32>
    %190 = arith.index_cast %165 : i32 to index
    %c0_53 = arith.constant 0 : index
    %191 = vector.load %arg8[%190, %c0_53] : memref<64x64xf32, #tpu.memory_space<vmem>>, vector<8x32xf32>
    tpu.vector_store %arg8[%190, %c0_53], %189 {strides = array<i32>} : memref<64x64xf32, #tpu.memory_space<vmem>>, vector<8x32xf32>,
    %192 = vector.extract_strided_slice %188 {offsets = [0, 32], sizes = [8, 32], strides = [1, 1]} : vector<8x64xf32> to vector<8x32xf32>
    %193 = arith.index_cast %168 : i32 to index
    %c32_54 = arith.constant 32 : index
    %194 = vector.load %arg8[%193, %c32_54] : memref<64x64xf32, #tpu.memory_space<vmem>>, vector<8x32xf32>
    tpu.vector_store %arg8[%193, %c32_54], %192 {strides = array<i32>} : memref<64x64xf32, #tpu.memory_space<vmem>>, vector<8x32xf32>,
    %c6_i32 = arith.constant 6 : i32
    %c8_i32_55 = arith.constant 8 : i32
    %195 = arith.muli %c6_i32, %c8_i32_55 : i32
    %196 = tpu.assume_multiple %195, 8 : i32
    %c7_i32_56 = arith.constant 7 : i32
    %197 = arith.subi %c7_i32_56, %c6_i32 : i32
    %c8_i32_57 = arith.constant 8 : i32
    %198 = arith.muli %197, %c8_i32_57 : i32
    %199 = tpu.assume_multiple %198, 8 : i32
    %200 = arith.index_cast %196 : i32 to index
    %c0_58 = arith.constant 0 : index
    %201 = vector.load %arg7[%200, %c0_58] : memref<64x256xf32, #tpu.memory_space<vmem>>, vector<8x256xf32>
    %cst_59 = arith.constant dense<0.000000e+00> : vector<8x256xf32>
    %202 = tpu.matmul %188, %0, %cst_59 {dimension_numbers = #tpu.dot_dimension_numbers<[1], [0], [0], [1], [0, 0, 1, 1], [], []>} : vector<8x64xf32>, vector<64x256xf32>, vector<8x256xf32> -> vector<8x256xf32>
    %203 = arith.addf %201, %202 : vector<8x256xf32>
    %204 = vector.extract_strided_slice %203 {offsets = [0, 0], sizes = [8, 192], strides = [1, 1]} : vector<8x256xf32> to vector<8x192xf32>
    %205 = arith.negf %204 : vector<8x192xf32>
    %206 = math.exp %205 : vector<8x192xf32>
    %cst_60 = arith.constant 1.000000e+00 : f32
    %207 = vector.broadcast %cst_60 : f32 to vector<8x192xf32>
    %208 = arith.addf %207, %206 : vector<8x192xf32>
    %209 = arith.divf %207, %208 : vector<8x192xf32>
    %210 = vector.extract_strided_slice %203 {offsets = [0, 192], sizes = [8, 64], strides = [1, 1]} : vector<8x256xf32> to vector<8x64xf32>
    %211 = math.tanh %210 : vector<8x64xf32>
    %212 = vector.extract_strided_slice %209 {offsets = [0, 0], sizes = [8, 64], strides = [1, 1]} : vector<8x192xf32> to vector<8x64xf32>
    %213 = vector.extract_strided_slice %209 {offsets = [0, 64], sizes = [8, 64], strides = [1, 1]} : vector<8x192xf32> to vector<8x64xf32>
    %214 = vector.extract_strided_slice %209 {offsets = [0, 128], sizes = [8, 64], strides = [1, 1]} : vector<8x192xf32> to vector<8x64xf32>
    %215 = arith.mulf %213, %186 : vector<8x64xf32>
    %216 = arith.mulf %212, %211 : vector<8x64xf32>
    %217 = arith.addf %215, %216 : vector<8x64xf32>
    %218 = math.tanh %217 : vector<8x64xf32>
    %219 = arith.mulf %214, %218 : vector<8x64xf32>
    %220 = vector.extract_strided_slice %219 {offsets = [0, 0], sizes = [8, 32], strides = [1, 1]} : vector<8x64xf32> to vector<8x32xf32>
    %221 = arith.index_cast %196 : i32 to index
    %c0_61 = arith.constant 0 : index
    %222 = vector.load %arg8[%221, %c0_61] : memref<64x64xf32, #tpu.memory_space<vmem>>, vector<8x32xf32>
    tpu.vector_store %arg8[%221, %c0_61], %220 {strides = array<i32>} : memref<64x64xf32, #tpu.memory_space<vmem>>, vector<8x32xf32>,
    %223 = vector.extract_strided_slice %219 {offsets = [0, 32], sizes = [8, 32], strides = [1, 1]} : vector<8x64xf32> to vector<8x32xf32>
    %224 = arith.index_cast %199 : i32 to index
    %c32_62 = arith.constant 32 : index
    %225 = vector.load %arg8[%224, %c32_62] : memref<64x64xf32, #tpu.memory_space<vmem>>, vector<8x32xf32>
    tpu.vector_store %arg8[%224, %c32_62], %223 {strides = array<i32>} : memref<64x64xf32, #tpu.memory_space<vmem>>, vector<8x32xf32>,
    %c7_i32_63 = arith.constant 7 : i32
    %c8_i32_64 = arith.constant 8 : i32
    %226 = arith.muli %c7_i32_63, %c8_i32_64 : i32
    %227 = tpu.assume_multiple %226, 8 : i32
    %c7_i32_65 = arith.constant 7 : i32
    %228 = arith.subi %c7_i32_65, %c7_i32_63 : i32
    %c8_i32_66 = arith.constant 8 : i32
    %229 = arith.muli %228, %c8_i32_66 : i32
    %230 = tpu.assume_multiple %229, 8 : i32
    %231 = arith.index_cast %227 : i32 to index
    %c0_67 = arith.constant 0 : index
    %232 = vector.load %arg7[%231, %c0_67] : memref<64x256xf32, #tpu.memory_space<vmem>>, vector<8x256xf32>
    %cst_68 = arith.constant dense<0.000000e+00> : vector<8x256xf32>
    %233 = tpu.matmul %219, %0, %cst_68 {dimension_numbers = #tpu.dot_dimension_numbers<[1], [0], [0], [1], [0, 0, 1, 1], [], []>} : vector<8x64xf32>, vector<64x256xf32>, vector<8x256xf32> -> vector<8x256xf32>
    %234 = arith.addf %232, %233 : vector<8x256xf32>
    %235 = vector.extract_strided_slice %234 {offsets = [0, 0], sizes = [8, 192], strides = [1, 1]} : vector<8x256xf32> to vector<8x192xf32>
    %236 = arith.negf %235 : vector<8x192xf32>
    %237 = math.exp %236 : vector<8x192xf32>
    %cst_69 = arith.constant 1.000000e+00 : f32
    %238 = vector.broadcast %cst_69 : f32 to vector<8x192xf32>
    %239 = arith.addf %238, %237 : vector<8x192xf32>
    %240 = arith.divf %238, %239 : vector<8x192xf32>
    %241 = vector.extract_strided_slice %234 {offsets = [0, 192], sizes = [8, 64], strides = [1, 1]} : vector<8x256xf32> to vector<8x64xf32>
    %242 = math.tanh %241 : vector<8x64xf32>
    %243 = vector.extract_strided_slice %240 {offsets = [0, 0], sizes = [8, 64], strides = [1, 1]} : vector<8x192xf32> to vector<8x64xf32>
    %244 = vector.extract_strided_slice %240 {offsets = [0, 64], sizes = [8, 64], strides = [1, 1]} : vector<8x192xf32> to vector<8x64xf32>
    %245 = vector.extract_strided_slice %240 {offsets = [0, 128], sizes = [8, 64], strides = [1, 1]} : vector<8x192xf32> to vector<8x64xf32>
    %246 = arith.mulf %244, %217 : vector<8x64xf32>
    %247 = arith.mulf %243, %242 : vector<8x64xf32>
    %248 = arith.addf %246, %247 : vector<8x64xf32>
    %249 = math.tanh %248 : vector<8x64xf32>
    %250 = arith.mulf %245, %249 : vector<8x64xf32>
    %251 = vector.extract_strided_slice %250 {offsets = [0, 0], sizes = [8, 32], strides = [1, 1]} : vector<8x64xf32> to vector<8x32xf32>
    %252 = arith.index_cast %227 : i32 to index
    %c0_70 = arith.constant 0 : index
    %253 = vector.load %arg8[%252, %c0_70] : memref<64x64xf32, #tpu.memory_space<vmem>>, vector<8x32xf32>
    tpu.vector_store %arg8[%252, %c0_70], %251 {strides = array<i32>} : memref<64x64xf32, #tpu.memory_space<vmem>>, vector<8x32xf32>,
    %254 = vector.extract_strided_slice %250 {offsets = [0, 32], sizes = [8, 32], strides = [1, 1]} : vector<8x64xf32> to vector<8x32xf32>
    %255 = arith.index_cast %230 : i32 to index
    %c32_71 = arith.constant 32 : index
    %256 = vector.load %arg8[%255, %c32_71] : memref<64x64xf32, #tpu.memory_space<vmem>>, vector<8x32xf32>
    tpu.vector_store %arg8[%255, %c32_71], %254 {strides = array<i32>} : memref<64x64xf32, #tpu.memory_space<vmem>>, vector<8x32xf32>,
    %c8_i32_72 = arith.constant 8 : i32
    %c0_73 = arith.constant 0 : index
    %c0_74 = arith.constant 0 : index
    %257 = vector.load %arg8[%c0_73, %c0_74] : memref<64x64xf32, #tpu.memory_space<vmem>>, vector<64x64xf32>
    %c0_75 = arith.constant 0 : index
    %c0_76 = arith.constant 0 : index
    %258 = vector.load %arg4[%c0_75, %c0_76] : memref<64x16xf32, #tpu.memory_space<vmem>>, vector<64x16xf32>
    %cst_77 = arith.constant dense<0.000000e+00> : vector<64x16xf32>
    %259 = tpu.matmul %257, %258, %cst_77 {dimension_numbers = #tpu.dot_dimension_numbers<[1], [0], [0], [1], [0, 0, 1, 1], [], []>} : vector<64x64xf32>, vector<64x16xf32>, vector<64x16xf32> -> vector<64x16xf32>
    %c0_78 = arith.constant 0 : index
    %c0_79 = arith.constant 0 : index
    %260 = vector.load %arg5[%c0_78, %c0_79] : memref<1x16xf32, #tpu.memory_space<vmem>>, vector<1x16xf32>
    %261 = vector.broadcast %260 : vector<1x16xf32> to vector<64x16xf32>
    %262 = arith.addf %259, %261 : vector<64x16xf32>
    %c0_80 = arith.constant 0 : index
    %c0_81 = arith.constant 0 : index
    %263 = vector.load %arg6[%c0_80, %c0_81] : memref<64x16xf32, #tpu.memory_space<vmem>>, vector<64x16xf32>
    tpu.vector_store %arg6[%c0_80, %c0_81], %262 {strides = array<i32>} : memref<64x16xf32, #tpu.memory_space<vmem>>, vector<64x16xf32>,
    return
  }
}

</mosaic_0001>

<llo_original>
// kernel: tpu_custom_call.1
$region0: #{tpu_custom_call.1}
  #allocation0 [shape = 'u32[]', space=smem, size = 0x4, offset = 0x4, fixed_abs, tag = 'smem constant byte address 0x4 - core index']
  #allocation1 [shape = 'u32[144,128]{1,0:T(1,128)}', space=vmem, size = 0x12000, scoped, tag = 'internal scratch']
  #allocation2 [shape = 'f32[64,256]{1,0:T(8,128)}', space=vmem, size = 0x10000, scoped, tag = 'scratch operand']
  #allocation3 [shape = 'f32[64,64]{1,0:T(8,128)}', space=vmem, size = 0x8000, scoped, tag = 'scratch operand']
  %s0 = inlined_call_operand.vmem [shape: f32[64,32], index: 0, kind: input, shape index: {}]
  %s1 = inlined_call_operand.hbm [shape: f32[32,256], index: 1, kind: input, shape index: {}]
  %s2 = inlined_call_operand.vmem [shape: f32[1,256], index: 2, kind: input, shape index: {}]
  %s3 = inlined_call_operand.vmem [shape: f32[64,256], index: 3, kind: input, shape index: {}]
  %s4 = inlined_call_operand.vmem [shape: f32[64,16], index: 4, kind: input, shape index: {}]
  %s5 = inlined_call_operand.vmem [shape: f32[1,16], index: 5, kind: input, shape index: {}]
  %s6 = inlined_call_operand.vmem [shape: f32[64,16], index: 6, kind: output, shape index: {}]
  %s7 = sld [smem:[#allocation0]]
  $region38: #{tpu_custom_call.1} parent=0
    _
  %s9 = ssub.s32 1, %s7
  %s10 = scalar_select 0, %s9, %s7
  $region1: #{tpu_custom_call.1} parent=0
    #allocation4 [shape = 'u8[32768]{0}', space=vmem, size = 0x8000, scoped, tag = 'input window, operand 1, single buffered']
    #allocation5 [shape = 's32[1]{0}', space=sflag, size = 0x4, scoped, tag = 'scoped memory for tpu_custom_call.1']
    %11 = vsyncpa [#allocation5], 0
    // Predicated region
    $region2: #{tpu_custom_call.1} parent=1 // pred_check
      _
    $region3: #{tpu_custom_call.1} parent=1 // pred_check_branch
      %13 = sbr.rel (0) target = $region5
    $region4: #{tpu_custom_call.1} parent=1 // pred_region
      _
    $region5: #{tpu_custom_call.1} parent=1 // pred_fallthru
      _
    // Predicated region
    $region6: #{tpu_custom_call.1} parent=1 // pred_check
      _
    $region7: #{tpu_custom_call.1} parent=1 // pred_check_branch
      %15 = sbr.rel (0) target = $region9
    $region8: #{tpu_custom_call.1} parent=1 // pred_region
      %s17 = ssub.s32 1024, 1024
      %18 = vsyncadd [#allocation5], %s17
      %s19 = sshll.u32 [#allocation4], 4
      %s20 = int_to_ptr.vmem [resolvable:$true] %s19
      %25 = dma.hbm_to_vmem [thread:$0]  %s1, 1024, %s20, [#allocation5], 256, 256, 16
    $region9: #{tpu_custom_call.1} parent=1 // pred_fallthru
      _
    // Predicated region
    $region10: #{tpu_custom_call.1} parent=1 // pred_check
      _
    $region11: #{tpu_custom_call.1} parent=1 // pred_check_branch
      %27 = sbr.rel (0) target = $region13
    $region12: #{tpu_custom_call.1} parent=1 // pred_region
      _
    $region13: #{tpu_custom_call.1} parent=1 // pred_fallthru
      _
    // Predicated region
    $region14: #{tpu_custom_call.1} parent=1 // pred_check
      _
    $region15: #{tpu_custom_call.1} parent=1 // pred_check_branch
      %29 = sbr.rel (0) target = $region17
    $region16: #{tpu_custom_call.1} parent=1 // pred_region
      _
    $region17: #{tpu_custom_call.1} parent=1 // pred_fallthru
      _
    // Predicated region
    $region18: #{tpu_custom_call.1} parent=1 // pred_check
      _
    $region19: #{tpu_custom_call.1} parent=1 // pred_check_branch
      %31 = sbr.rel (0) target = $region21
    $region20: #{tpu_custom_call.1} parent=1 // pred_region
      _
    $region21: #{tpu_custom_call.1} parent=1 // pred_fallthru
      _
    // Predicated region
    $region22: #{tpu_custom_call.1} parent=1 // pred_check
      _
    $region23: #{tpu_custom_call.1} parent=1 // pred_check_branch
      %33 = sbr.rel (0) target = $region25
    $region24: #{tpu_custom_call.1} parent=1 // pred_region
      _
    $region25: #{tpu_custom_call.1} parent=1 // pred_fallthru
      _
    // Predicated region
    $region26: #{tpu_custom_call.1} parent=1 // pred_check
      _
    $region27: #{tpu_custom_call.1} parent=1 // pred_check_branch
      %35 = sbr.rel (0) target = $region29
    $region28: #{tpu_custom_call.1} parent=1 // pred_region
      %36 = dma.done [#allocation5], 1024
    $region29: #{tpu_custom_call.1} parent=1 // pred_fallthru
      _
    %v37 = vld [vmem:[%s3] sm:$0xff]
    %v38 = vld [vmem:[%s3 + $0x8] sm:$0xff]
    %v39 = vld [vmem:[%s3 + $0x10] sm:$0xff]
    %v40 = vld [vmem:[%s3 + $0x18] sm:$0xff]
    %v41 = vld [vmem:[%s3 + $0x20] sm:$0xff]
    %v42 = vld [vmem:[%s3 + $0x28] sm:$0xff]
    %v43 = vld [vmem:[%s3 + $0x30] sm:$0xff]
    %v44 = vld [vmem:[%s3 + $0x38] sm:$0xff]
    %v45 = vld [vmem:[%s3 + $0x40] sm:$0xff]
    %v46 = vld [vmem:[%s3 + $0x48] sm:$0xff]
    %v47 = vld [vmem:[%s3 + $0x50] sm:$0xff]
    %v48 = vld [vmem:[%s3 + $0x58] sm:$0xff]
    %v49 = vld [vmem:[%s3 + $0x60] sm:$0xff]
    %v50 = vld [vmem:[%s3 + $0x68] sm:$0xff]
    %v51 = vld [vmem:[%s3 + $0x70] sm:$0xff]
    %v52 = vld [vmem:[%s3 + $0x78] sm:$0xff]
    %v53 = vld [vmem:[%s0] sm:$0xff]
    %v54 = vld [vmem:[%s0 + $0x8] sm:$0xff]
    %v55 = vld [vmem:[%s0 + $0x10] sm:$0xff]
    %v56 = vld [vmem:[%s0 + $0x18] sm:$0xff]
    %v57 = vld [vmem:[%s0 + $0x20] sm:$0xff]
    %v58 = vld [vmem:[%s0 + $0x28] sm:$0xff]
    %v59 = vld [vmem:[%s0 + $0x30] sm:$0xff]
    %v60 = vld [vmem:[%s0 + $0x38] sm:$0xff]
    %v61 = vld [vmem:[#allocation4] sm:$0xff]
    %v62 = vld [vmem:[#allocation4 + $0x8] sm:$0xff]
    %v63 = vld [vmem:[#allocation4 + $0x10] sm:$0xff]
    %v64 = vld [vmem:[#allocation4 + $0x18] sm:$0xff]
    %v65 = vld [vmem:[#allocation4 + $0x20] sm:$0xff]
    %v66 = vld [vmem:[#allocation4 + $0x28] sm:$0xff]
    %v67 = vld [vmem:[#allocation4 + $0x30] sm:$0xff]
    %v68 = vld [vmem:[#allocation4 + $0x38] sm:$0xff]
    %v69 = vld [vmem:[%s2] sm:$0x3]
    %v71 = vlaneseq
    %v72 = vshrl.u32 %v71, 7
    %v73 = vsub.s32 0, %v72
    %v74 = vrot.slane %v69, %v73
    %v75 = vlaneseq
    %v76 = vshrl.u32 %v75, 7
    %v77 = vsub.s32 1, %v76
    %v78 = vrot.slane %v69, %v77
    %vm81 = vcmask 261120
    %v83 = vsel %vm81, %v53, 0
    %v86 = vsel %vm81, %v54, 0
    %v89 = vsel %vm81, %v55, 0
    %v92 = vsel %vm81, %v56, 0
    %v95 = vsel %vm81, %v57, 0
    %v98 = vsel %vm81, %v58, 0
    %v101 = vsel %vm81, %v59, 0
    %v104 = vsel %vm81, %v60, 0
    %106 = vmatprep.subr.mxu0 %v62
    %107 = vmatpush1.msra.mxu0 %v61
    %108 = vmatprep.subr.mxu0 %v64
    %109 = vmatpush1.msra.mxu0 %v63
    %110 = vmatprep.subr.mxu0 %v66
    %111 = vmatpush1.msra.mxu0 %v65
    %112 = vmatprep.subr.mxu0 %v68
    %113 = vmatpush1.msra.mxu0 %v67
    %114 = vmatprep.subr.mxu0 0.0
    %115 = vmatpush1.msra.mxu0 0.0
    %116 = vmatprep.subr.mxu0 0.0
    %117 = vmatpush1.msra.mxu0 0.0
    %118 = vmatprep.subr.mxu0 0.0
    %119 = vmatpush1.msra.mxu0 0.0
    %120 = vmatprep.subr.mxu0 0.0
    %121 = vmatpush1.msra.mxu0 0.0
    %122 = vmatprep.subr.mxu0 0.0
    %123 = vmatpush1.msra.mxu0 0.0
    %124 = vmatprep.subr.mxu0 0.0
    %125 = vmatpush1.msra.mxu0 0.0
    %126 = vmatprep.subr.mxu0 0.0
    %127 = vmatpush1.msra.mxu0 0.0
    %128 = vmatprep.subr.mxu0 0.0
    %129 = vmatpush1.msra.mxu0 0.0
    %130 = vmatprep.subr.mxu0 0.0
    %131 = vmatpush1.msra.mxu0 0.0
    %132 = vmatprep.subr.mxu0 0.0
    %133 = vmatpush1.msra.mxu0 0.0
    %134 = vmatprep.subr.mxu0 0.0
    %135 = vmatpush1.msra.mxu0 0.0
    %136 = vmatprep.subr.mxu0 0.0
    %137 = vmatpush1.msra.mxu0 0.0
    %138 = vmatprep.subr.mxu0 0.0
    %139 = vmatpush1.msra.mxu0 0.0
    %140 = vmatprep.subr.mxu0 0.0
    %141 = vmatpush1.msra.mxu0 0.0
    %142 = vmatprep.subr.mxu0 0.0
    %143 = vmatpush1.msra.mxu0 0.0
    %144 = vmatprep.subr.mxu0 0.0
    %145 = vmatpush1.msra.mxu0 0.0
    %146 = vmatprep.subr.mxu0 0.0
    %147 = vmatpush1.msra.mxu0 0.0
    %148 = vmatprep.subr.mxu0 0.0
    %149 = vmatpush1.msra.mxu0 0.0
    %150 = vmatprep.subr.mxu0 0.0
    %151 = vmatpush1.msra.mxu0 0.0
    %152 = vmatprep.subr.mxu0 0.0
    %153 = vmatpush1.msra.mxu0 0.0
    %154 = vmatprep.subr.mxu0 0.0
    %155 = vmatpush1.msra.mxu0 0.0
    %156 = vmatprep.subr.mxu0 0.0
    %157 = vmatpush1.msra.mxu0 0.0
    %158 = vmatprep.subr.mxu0 0.0
    %159 = vmatpush1.msra.mxu0 0.0
    %160 = vmatprep.subr.mxu0 0.0
    %161 = vmatpush1.msra.mxu0 0.0
    %162 = vmatprep.subr.mxu0 0.0
    %163 = vmatpush1.msra.mxu0 0.0
    %164 = vmatprep.subr.mxu0 0.0
    %165 = vmatpush1.msra.mxu0 0.0
    %166 = vmatprep.subr.mxu0 0.0
    %167 = vmatpush1.msra.mxu0 0.0
    %168 = vmatprep.subr.mxu0 0.0
    %169 = vmatpush1.msra.mxu0 0.0
    %170 = vmatprep.mubr.f32.mxu0 0.0
    %171 = vmatmul.mubr.f32.gmra.mrb[0].mxu0 %v83
    %v172 = vpop.f32.mrb[0].mxu0
    %v173 = vadd.f32 %v74, %v172
    %v174 = vpop.f32.mrb[0].mxu0
    %v175 = vadd.f32 %v78, %v174
    %176 = vmatprep.mubr.f32.mxu0 0.0
    %177 = vmatmul.mubr.f32.gmra.mrb[0].mxu0 %v86
    %v178 = vpop.f32.mrb[0].mxu0
    %v179 = vadd.f32 %v74, %v178
    %v180 = vpop.f32.mrb[0].mxu0
    %v181 = vadd.f32 %v78, %v180
    %182 = vmatprep.mubr.f32.mxu0 0.0
    %183 = vmatmul.mubr.f32.gmra.mrb[0].mxu0 %v89
    %v184 = vpop.f32.mrb[0].mxu0
    %v185 = vadd.f32 %v74, %v184
    %v186 = vpop.f32.mrb[0].mxu0
    %v187 = vadd.f32 %v78, %v186
    %188 = vmatprep.mubr.f32.mxu0 0.0
    %189 = vmatmul.mubr.f32.gmra.mrb[0].mxu0 %v92
    %v190 = vpop.f32.mrb[0].mxu0
    %v191 = vadd.f32 %v74, %v190
    %v192 = vpop.f32.mrb[0].mxu0
    %v193 = vadd.f32 %v78, %v192
    %194 = vmatprep.mubr.f32.mxu0 0.0
    %195 = vmatmul.mubr.f32.gmra.mrb[0].mxu0 %v95
    %v196 = vpop.f32.mrb[0].mxu0
    %v197 = vadd.f32 %v74, %v196
    %v198 = vpop.f32.mrb[0].mxu0
    %v199 = vadd.f32 %v78, %v198
    %200 = vmatprep.mubr.f32.mxu0 0.0
    %201 = vmatmul.mubr.f32.gmra.mrb[0].mxu0 %v98
    %v202 = vpop.f32.mrb[0].mxu0
    %v203 = vadd.f32 %v74, %v202
    %v204 = vpop.f32.mrb[0].mxu0
    %v205 = vadd.f32 %v78, %v204
    %206 = vmatprep.mubr.f32.mxu0 0.0
    %207 = vmatmul.mubr.f32.gmra.mrb[0].mxu0 %v101
    %v208 = vpop.f32.mrb[0].mxu0
    %v209 = vadd.f32 %v74, %v208
    %v210 = vpop.f32.mrb[0].mxu0
    %v211 = vadd.f32 %v78, %v210
    %212 = vmatprep.mubr.f32.mxu0 0.0
    %213 = vmatmul.mubr.f32.gmra.mrb[0].mxu0 %v104
    %v214 = vpop.f32.mrb[0].mxu0
    %v215 = vadd.f32 %v74, %v214
    %v216 = vpop.f32.mrb[0].mxu0
    %v217 = vadd.f32 %v78, %v216
    %218 = vdwg.mxu0
    %219 = vst [vmem:[#allocation2] sm:$0xff] %v173
    %220 = vst [vmem:[#allocation2 + $0x8] sm:$0xff] %v175
    %221 = vst [vmem:[#allocation2 + $0x10] sm:$0xff] %v179
    %222 = vst [vmem:[#allocation2 + $0x18] sm:$0xff] %v181
    %223 = vst [vmem:[#allocation2 + $0x20] sm:$0xff] %v185
    %224 = vst [vmem:[#allocation2 + $0x28] sm:$0xff] %v187
    %225 = vst [vmem:[#allocation2 + $0x30] sm:$0xff] %v191
    %226 = vst [vmem:[#allocation2 + $0x38] sm:$0xff] %v193
    %227 = vst [vmem:[#allocation2 + $0x40] sm:$0xff] %v197
    %228 = vst [vmem:[#allocation2 + $0x48] sm:$0xff] %v199
    %229 = vst [vmem:[#allocation2 + $0x50] sm:$0xff] %v203
    %230 = vst [vmem:[#allocation2 + $0x58] sm:$0xff] %v205
    %231 = vst [vmem:[#allocation2 + $0x60] sm:$0xff] %v209
    %232 = vst [vmem:[#allocation2 + $0x68] sm:$0xff] %v211
    %233 = vst [vmem:[#allocation2 + $0x70] sm:$0xff] %v215
    %234 = vst [vmem:[#allocation2 + $0x78] sm:$0xff] %v217
    %s235 = smul.u32 0, 2
    %s236 = smul.addr %s235, 8
    %s237 = scalar_lea.vmem [#allocation2], %s236
    %v238 = vld [vmem:[%s237] sm:$0xff]
    %v239 = vld [vmem:[%s237 + $0x8] sm:$0xff]
    %vm240 = vcmask 523264
    %v242 = vsel %vm240, 0.0, 0
    %244 = vmatprep.subr.mxu0 %v38
    %245 = vmatpush1.msra.mxu0 %v37
    %246 = vmatprep.subr.mxu0 %v40
    %247 = vmatpush1.msra.mxu0 %v39
    %248 = vmatprep.subr.mxu0 %v42
    %249 = vmatpush1.msra.mxu0 %v41
    %250 = vmatprep.subr.mxu0 %v44
    %251 = vmatpush1.msra.mxu0 %v43
    %252 = vmatprep.subr.mxu0 %v46
    %253 = vmatpush1.msra.mxu0 %v45
    %254 = vmatprep.subr.mxu0 %v48
    %255 = vmatpush1.msra.mxu0 %v47
    %256 = vmatprep.subr.mxu0 %v50
    %257 = vmatpush1.msra.mxu0 %v49
    %258 = vmatprep.subr.mxu0 %v52
    %259 = vmatpush1.msra.mxu0 %v51
    %260 = vmatprep.subr.mxu0 0.0
    %261 = vmatpush1.msra.mxu0 0.0
    %262 = vmatprep.subr.mxu0 0.0
    %263 = vmatpush1.msra.mxu0 0.0
    %264 = vmatprep.subr.mxu0 0.0
    %265 = vmatpush1.msra.mxu0 0.0
    %266 = vmatprep.subr.mxu0 0.0
    %267 = vmatpush1.msra.mxu0 0.0
    %268 = vmatprep.subr.mxu0 0.0
    %269 = vmatpush1.msra.mxu0 0.0
    %270 = vmatprep.subr.mxu0 0.0
    %271 = vmatpush1.msra.mxu0 0.0
    %272 = vmatprep.subr.mxu0 0.0
    %273 = vmatpush1.msra.mxu0 0.0
    %274 = vmatprep.subr.mxu0 0.0
    %275 = vmatpush1.msra.mxu0 0.0
    %276 = vmatprep.subr.mxu0 0.0
    %277 = vmatpush1.msra.mxu0 0.0
    %278 = vmatprep.subr.mxu0 0.0
    %279 = vmatpush1.msra.mxu0 0.0
    %280 = vmatprep.subr.mxu0 0.0
    %281 = vmatpush1.msra.mxu0 0.0
    %282 = vmatprep.subr.mxu0 0.0
    %283 = vmatpush1.msra.mxu0 0.0
    %284 = vmatprep.subr.mxu0 0.0
    %285 = vmatpush1.msra.mxu0 0.0
    %286 = vmatprep.subr.mxu0 0.0
    %287 = vmatpush1.msra.mxu0 0.0
    %288 = vmatprep.subr.mxu0 0.0
    %289 = vmatpush1.msra.mxu0 0.0
    %290 = vmatprep.subr.mxu0 0.0
    %291 = vmatpush1.msra.mxu0 0.0
    %292 = vmatprep.subr.mxu0 0.0
    %293 = vmatpush1.msra.mxu0 0.0
    %294 = vmatprep.subr.mxu0 0.0
    %295 = vmatpush1.msra.mxu0 0.0
    %296 = vmatprep.subr.mxu0 0.0
    %297 = vmatpush1.msra.mxu0 0.0
    %298 = vmatprep.subr.mxu0 0.0
    %299 = vmatpush1.msra.mxu0 0.0
    %300 = vmatprep.subr.mxu0 0.0
    %301 = vmatpush1.msra.mxu0 0.0
    %302 = vmatprep.subr.mxu0 0.0
    %303 = vmatpush1.msra.mxu0 0.0
    %304 = vmatprep.subr.mxu0 0.0
    %305 = vmatpush1.msra.mxu0 0.0
    %306 = vmatprep.subr.mxu0 0.0
    %307 = vmatpush1.msra.mxu0 0.0
    %308 = vmatprep.mubr.f32.mxu0 0.0
    %309 = vmatmul.mubr.f32.gmra.mrb[0].mxu0 %v242
    %v310 = vpop.f32.mrb[0].mxu0
    %v311 = vadd.f32 0.0, %v310
    %v312 = vpop.f32.mrb[0].mxu0
    %v313 = vadd.f32 0.0, %v312
    %314 = vdwg.mxu0
    %v315 = vadd.f32 %v238, %v311
    %v316 = vadd.f32 %v239, %v313
    %v317 = vxor.u32 %v315, 2147483648
    %v318 = vxor.u32 %v316, 2147483648
    %v319 = vmul.f32 %v317, 1.442695
    %v320 = vpow.pop %v319
    %v321 = vmul.f32 %v318, 1.442695
    %v322 = vpow.pop %v321
    %v323 = vadd.f32 %v320, 1.0
    %v324 = vadd.f32 %v322, 1.0
    %v325 = vrcp.pop %v323
    %v326 = vmul.f32 1.0, %v325
    %v327 = vrcp.pop %v324
    %v328 = vmul.f32 1.0, %v327
    %v329 = vtanh.pop %v316
    %v330 = vmul.f32 %v326, 0.0
    %332 = vrot.lane.b32.xlu0 %v329, 64
    %v333 = vpop.permute.xlu0 %332
    %v335 = vmul.f32 %v326, %v333
    %337 = vrot.lane.b32.xlu0 %v335, 64
    %v338 = vpop.permute.xlu0 %337
    %v340 = vadd.f32 %v330, %v338
    %v341 = vtanh.pop %v340
    %343 = vrot.lane.b32.xlu0 %v341, 64
    %v344 = vpop.permute.xlu0 %343
    %v346 = vmul.f32 %v328, %v344
    %347 = vst.msk [vmem:[#allocation3] sm:$0xff] %vm81, %v346
    %s348 = scalar_lea.vmem [#allocation3], 56
    %vm349 = vcmask 523520
    %350 = vst.msk [vmem:[%s348] sm:$0xff] %vm349, %v346
    %s351 = smul.u32 1, 2
    %s352 = smul.addr %s351, 8
    %s353 = scalar_lea.vmem [#allocation2], %s352
    %v354 = vld [vmem:[%s353] sm:$0xff]
    %v355 = vld [vmem:[%s353 + $0x8] sm:$0xff]
    %v357 = vsel %vm240, %v346, 0
    %359 = vmatprep.subr.mxu0 %v38
    %360 = vmatpush1.msra.mxu0 %v37
    %361 = vmatprep.subr.mxu0 %v40
    %362 = vmatpush1.msra.mxu0 %v39
    %363 = vmatprep.subr.mxu0 %v42
    %364 = vmatpush1.msra.mxu0 %v41
    %365 = vmatprep.subr.mxu0 %v44
    %366 = vmatpush1.msra.mxu0 %v43
    %367 = vmatprep.subr.mxu0 %v46
    %368 = vmatpush1.msra.mxu0 %v45
    %369 = vmatprep.subr.mxu0 %v48
    %370 = vmatpush1.msra.mxu0 %v47
    %371 = vmatprep.subr.mxu0 %v50
    %372 = vmatpush1.msra.mxu0 %v49
    %373 = vmatprep.subr.mxu0 %v52
    %374 = vmatpush1.msra.mxu0 %v51
    %375 = vmatprep.subr.mxu0 0.0
    %376 = vmatpush1.msra.mxu0 0.0
    %377 = vmatprep.subr.mxu0 0.0
    %378 = vmatpush1.msra.mxu0 0.0
    %379 = vmatprep.subr.mxu0 0.0
    %380 = vmatpush1.msra.mxu0 0.0
    %381 = vmatprep.subr.mxu0 0.0
    %382 = vmatpush1.msra.mxu0 0.0
    %383 = vmatprep.subr.mxu0 0.0
    %384 = vmatpush1.msra.mxu0 0.0
    %385 = vmatprep.subr.mxu0 0.0
    %386 = vmatpush1.msra.mxu0 0.0
    %387 = vmatprep.subr.mxu0 0.0
    %388 = vmatpush1.msra.mxu0 0.0
    %389 = vmatprep.subr.mxu0 0.0
    %390 = vmatpush1.msra.mxu0 0.0
    %391 = vmatprep.subr.mxu0 0.0
    %392 = vmatpush1.msra.mxu0 0.0
    %393 = vmatprep.subr.mxu0 0.0
    %394 = vmatpush1.msra.mxu0 0.0
    %395 = vmatprep.subr.mxu0 0.0
    %396 = vmatpush1.msra.mxu0 0.0
    %397 = vmatprep.subr.mxu0 0.0
    %398 = vmatpush1.msra.mxu0 0.0
    %399 = vmatprep.subr.mxu0 0.0
    %400 = vmatpush1.msra.mxu0 0.0
    %401 = vmatprep.subr.mxu0 0.0
    %402 = vmatpush1.msra.mxu0 0.0
    %403 = vmatprep.subr.mxu0 0.0
    %404 = vmatpush1.msra.mxu0 0.0
    %405 = vmatprep.subr.mxu0 0.0
    %406 = vmatpush1.msra.mxu0 0.0
    %407 = vmatprep.subr.mxu0 0.0
    %408 = vmatpush1.msra.mxu0 0.0
    %409 = vmatprep.subr.mxu0 0.0
    %410 = vmatpush1.msra.mxu0 0.0
    %411 = vmatprep.subr.mxu0 0.0
    %412 = vmatpush1.msra.mxu0 0.0
    %413 = vmatprep.subr.mxu0 0.0
    %414 = vmatpush1.msra.mxu0 0.0
    %415 = vmatprep.subr.mxu0 0.0
    %416 = vmatpush1.msra.mxu0 0.0
    %417 = vmatprep.subr.mxu0 0.0
    %418 = vmatpush1.msra.mxu0 0.0
    %419 = vmatprep.subr.mxu0 0.0
    %420 = vmatpush1.msra.mxu0 0.0
    %421 = vmatprep.subr.mxu0 0.0
    %422 = vmatpush1.msra.mxu0 0.0
    %423 = vmatprep.mubr.f32.mxu0 0.0
    %424 = vmatmul.mubr.f32.gmra.mrb[0].mxu0 %v357
    %v425 = vpop.f32.mrb[0].mxu0
    %v426 = vadd.f32 0.0, %v425
    %v427 = vpop.f32.mrb[0].mxu0
    %v428 = vadd.f32 0.0, %v427
    %429 = vdwg.mxu0
    %v430 = vadd.f32 %v354, %v426
    %v431 = vadd.f32 %v355, %v428
    %v432 = vxor.u32 %v430, 2147483648
    %v433 = vxor.u32 %v431, 2147483648
    %v434 = vmul.f32 %v432, 1.442695
    %v435 = vpow.pop %v434
    %v436 = vmul.f32 %v433, 1.442695
    %v437 = vpow.pop %v436
    %v438 = vadd.f32 %v435, 1.0
    %v439 = vadd.f32 %v437, 1.0
    %v440 = vrcp.pop %v438
    %v441 = vmul.f32 1.0, %v440
    %v442 = vrcp.pop %v439
    %v443 = vmul.f32 1.0, %v442
    %v444 = vtanh.pop %v431
    %v445 = vmul.f32 %v441, %v340
    %447 = vrot.lane.b32.xlu0 %v444, 64
    %v448 = vpop.permute.xlu0 %447
    %v450 = vmul.f32 %v441, %v448
    %452 = vrot.lane.b32.xlu0 %v450, 64
    %v453 = vpop.permute.xlu0 %452
    %v455 = vadd.f32 %v445, %v453
    %v456 = vtanh.pop %v455
    %458 = vrot.lane.b32.xlu0 %v456, 64
    %v459 = vpop.permute.xlu0 %458
    %v461 = vmul.f32 %v443, %v459
    %s462 = scalar_lea.vmem [#allocation3], 8
    %463 = vst.msk [vmem:[%s462] sm:$0xff] %vm81, %v461
    %s464 = scalar_lea.vmem [#allocation3], 48
    %465 = vst.msk [vmem:[%s464] sm:$0xff] %vm349, %v461
    %s466 = smul.u32 2, 2
    %s467 = smul.addr %s466, 8
    %s468 = scalar_lea.vmem [#allocation2], %s467
    %v469 = vld [vmem:[%s468] sm:$0xff]
    %v470 = vld [vmem:[%s468 + $0x8] sm:$0xff]
    %v472 = vsel %vm240, %v461, 0
    %474 = vmatprep.subr.mxu0 %v38
    %475 = vmatpush1.msra.mxu0 %v37
    %476 = vmatprep.subr.mxu0 %v40
    %477 = vmatpush1.msra.mxu0 %v39
    %478 = vmatprep.subr.mxu0 %v42
    %479 = vmatpush1.msra.mxu0 %v41
    %480 = vmatprep.subr.mxu0 %v44
    %481 = vmatpush1.msra.mxu0 %v43
    %482 = vmatprep.subr.mxu0 %v46
    %483 = vmatpush1.msra.mxu0 %v45
    %484 = vmatprep.subr.mxu0 %v48
    %485 = vmatpush1.msra.mxu0 %v47
    %486 = vmatprep.subr.mxu0 %v50
    %487 = vmatpush1.msra.mxu0 %v49
    %488 = vmatprep.subr.mxu0 %v52
    %489 = vmatpush1.msra.mxu0 %v51
    %490 = vmatprep.subr.mxu0 0.0
    %491 = vmatpush1.msra.mxu0 0.0
    %492 = vmatprep.subr.mxu0 0.0
    %493 = vmatpush1.msra.mxu0 0.0
    %494 = vmatprep.subr.mxu0 0.0
    %495 = vmatpush1.msra.mxu0 0.0
    %496 = vmatprep.subr.mxu0 0.0
    %497 = vmatpush1.msra.mxu0 0.0
    %498 = vmatprep.subr.mxu0 0.0
    %499 = vmatpush1.msra.mxu0 0.0
    %500 = vmatprep.subr.mxu0 0.0
    %501 = vmatpush1.msra.mxu0 0.0
    %502 = vmatprep.subr.mxu0 0.0
    %503 = vmatpush1.msra.mxu0 0.0
    %504 = vmatprep.subr.mxu0 0.0
    %505 = vmatpush1.msra.mxu0 0.0
    %506 = vmatprep.subr.mxu0 0.0
    %507 = vmatpush1.msra.mxu0 0.0
    %508 = vmatprep.subr.mxu0 0.0
    %509 = vmatpush1.msra.mxu0 0.0
    %510 = vmatprep.subr.mxu0 0.0
    %511 = vmatpush1.msra.mxu0 0.0
    %512 = vmatprep.subr.mxu0 0.0
    %513 = vmatpush1.msra.mxu0 0.0
    %514 = vmatprep.subr.mxu0 0.0
    %515 = vmatpush1.msra.mxu0 0.0
    %516 = vmatprep.subr.mxu0 0.0
    %517 = vmatpush1.msra.mxu0 0.0
    %518 = vmatprep.subr.mxu0 0.0
    %519 = vmatpush1.msra.mxu0 0.0
    %520 = vmatprep.subr.mxu0 0.0
    %521 = vmatpush1.msra.mxu0 0.0
    %522 = vmatprep.subr.mxu0 0.0
    %523 = vmatpush1.msra.mxu0 0.0
    %524 = vmatprep.subr.mxu0 0.0
    %525 = vmatpush1.msra.mxu0 0.0
    %526 = vmatprep.subr.mxu0 0.0
    %527 = vmatpush1.msra.mxu0 0.0
    %528 = vmatprep.subr.mxu0 0.0
    %529 = vmatpush1.msra.mxu0 0.0
    %530 = vmatprep.subr.mxu0 0.0
    %531 = vmatpush1.msra.mxu0 0.0
    %532 = vmatprep.subr.mxu0 0.0
    %533 = vmatpush1.msra.mxu0 0.0
    %534 = vmatprep.subr.mxu0 0.0
    %535 = vmatpush1.msra.mxu0 0.0
    %536 = vmatprep.subr.mxu0 0.0
    %537 = vmatpush1.msra.mxu0 0.0
    %538 = vmatprep.mubr.f32.mxu0 0.0
    %539 = vmatmul.mubr.f32.gmra.mrb[0].mxu0 %v472
    %v540 = vpop.f32.mrb[0].mxu0
    %v541 = vadd.f32 0.0, %v540
    %v542 = vpop.f32.mrb[0].mxu0
    %v543 = vadd.f32 0.0, %v542
    %544 = vdwg.mxu0
    %v545 = vadd.f32 %v469, %v541
    %v546 = vadd.f32 %v470, %v543
    %v547 = vxor.u32 %v545, 2147483648
    %v548 = vxor.u32 %v546, 2147483648
    %v549 = vmul.f32 %v547, 1.442695
    %v550 = vpow.pop %v549
    %v551 = vmul.f32 %v548, 1.442695
    %v552 = vpow.pop %v551
    %v553 = vadd.f32 %v550, 1.0
    %v554 = vadd.f32 %v552, 1.0
    %v555 = vrcp.pop %v553
    %v556 = vmul.f32 1.0, %v555
    %v557 = vrcp.pop %v554
    %v558 = vmul.f32 1.0, %v557
    %v559 = vtanh.pop %v546
    %v560 = vmul.f32 %v556, %v455
    %562 = vrot.lane.b32.xlu0 %v559, 64
    %v563 = vpop.permute.xlu0 %562
    %v565 = vmul.f32 %v556, %v563
    %567 = vrot.lane.b32.xlu0 %v565, 64
    %v568 = vpop.permute.xlu0 %567
    %v570 = vadd.f32 %v560, %v568
    %v571 = vtanh.pop %v570
    %573 = vrot.lane.b32.xlu0 %v571, 64
    %v574 = vpop.permute.xlu0 %573
    %v576 = vmul.f32 %v558, %v574
    %s577 = scalar_lea.vmem [#allocation3], 16
    %578 = vst.msk [vmem:[%s577] sm:$0xff] %vm81, %v576
    %s579 = scalar_lea.vmem [#allocation3], 40
    %580 = vst.msk [vmem:[%s579] sm:$0xff] %vm349, %v576
    %s581 = smul.u32 3, 2
    %s582 = smul.addr %s581, 8
    %s583 = scalar_lea.vmem [#allocation2], %s582
    %v584 = vld [vmem:[%s583] sm:$0xff]
    %v585 = vld [vmem:[%s583 + $0x8] sm:$0xff]
    %v587 = vsel %vm240, %v576, 0
    %589 = vmatprep.subr.mxu0 %v38
    %590 = vmatpush1.msra.mxu0 %v37
    %591 = vmatprep.subr.mxu0 %v40
    %592 = vmatpush1.msra.mxu0 %v39
    %593 = vmatprep.subr.mxu0 %v42
    %594 = vmatpush1.msra.mxu0 %v41
    %595 = vmatprep.subr.mxu0 %v44
    %596 = vmatpush1.msra.mxu0 %v43
    %597 = vmatprep.subr.mxu0 %v46
    %598 = vmatpush1.msra.mxu0 %v45
    %599 = vmatprep.subr.mxu0 %v48
    %600 = vmatpush1.msra.mxu0 %v47
    %601 = vmatprep.subr.mxu0 %v50
    %602 = vmatpush1.msra.mxu0 %v49
    %603 = vmatprep.subr.mxu0 %v52
    %604 = vmatpush1.msra.mxu0 %v51
    %605 = vmatprep.subr.mxu0 0.0
    %606 = vmatpush1.msra.mxu0 0.0
    %607 = vmatprep.subr.mxu0 0.0
    %608 = vmatpush1.msra.mxu0 0.0
    %609 = vmatprep.subr.mxu0 0.0
    %610 = vmatpush1.msra.mxu0 0.0
    %611 = vmatprep.subr.mxu0 0.0
    %612 = vmatpush1.msra.mxu0 0.0
    %613 = vmatprep.subr.mxu0 0.0
    %614 = vmatpush1.msra.mxu0 0.0
    %615 = vmatprep.subr.mxu0 0.0
    %616 = vmatpush1.msra.mxu0 0.0
    %617 = vmatprep.subr.mxu0 0.0
    %618 = vmatpush1.msra.mxu0 0.0
    %619 = vmatprep.subr.mxu0 0.0
    %620 = vmatpush1.msra.mxu0 0.0
    %621 = vmatprep.subr.mxu0 0.0
    %622 = vmatpush1.msra.mxu0 0.0
    %623 = vmatprep.subr.mxu0 0.0
    %624 = vmatpush1.msra.mxu0 0.0
    %625 = vmatprep.subr.mxu0 0.0
    %626 = vmatpush1.msra.mxu0 0.0
    %627 = vmatprep.subr.mxu0 0.0
    %628 = vmatpush1.msra.mxu0 0.0
    %629 = vmatprep.subr.mxu0 0.0
    %630 = vmatpush1.msra.mxu0 0.0
    %631 = vmatprep.subr.mxu0 0.0
    %632 = vmatpush1.msra.mxu0 0.0
    %633 = vmatprep.subr.mxu0 0.0
    %634 = vmatpush1.msra.mxu0 0.0
    %635 = vmatprep.subr.mxu0 0.0
    %636 = vmatpush1.msra.mxu0 0.0
    %637 = vmatprep.subr.mxu0 0.0
    %638 = vmatpush1.msra.mxu0 0.0
    %639 = vmatprep.subr.mxu0 0.0
    %640 = vmatpush1.msra.mxu0 0.0
    %641 = vmatprep.subr.mxu0 0.0
    %642 = vmatpush1.msra.mxu0 0.0
    %643 = vmatprep.subr.mxu0 0.0
    %644 = vmatpush1.msra.mxu0 0.0
    %645 = vmatprep.subr.mxu0 0.0
    %646 = vmatpush1.msra.mxu0 0.0
    %647 = vmatprep.subr.mxu0 0.0
    %648 = vmatpush1.msra.mxu0 0.0
    %649 = vmatprep.subr.mxu0 0.0
    %650 = vmatpush1.msra.mxu0 0.0
    %651 = vmatprep.subr.mxu0 0.0
    %652 = vmatpush1.msra.mxu0 0.0
    %653 = vmatprep.mubr.f32.mxu0 0.0
    %654 = vmatmul.mubr.f32.gmra.mrb[0].mxu0 %v587
    %v655 = vpop.f32.mrb[0].mxu0
    %v656 = vadd.f32 0.0, %v655
    %v657 = vpop.f32.mrb[0].mxu0
    %v658 = vadd.f32 0.0, %v657
    %659 = vdwg.mxu0
    %v660 = vadd.f32 %v584, %v656
    %v661 = vadd.f32 %v585, %v658
    %v662 = vxor.u32 %v660, 2147483648
    %v663 = vxor.u32 %v661, 2147483648
    %v664 = vmul.f32 %v662, 1.442695
    %v665 = vpow.pop %v664
    %v666 = vmul.f32 %v663, 1.442695
    %v667 = vpow.pop %v666
    %v668 = vadd.f32 %v665, 1.0
    %v669 = vadd.f32 %v667, 1.0
    %v670 = vrcp.pop %v668
    %v671 = vmul.f32 1.0, %v670
    %v672 = vrcp.pop %v669
    %v673 = vmul.f32 1.0, %v672
    %v674 = vtanh.pop %v661
    %v675 = vmul.f32 %v671, %v570
    %677 = vrot.lane.b32.xlu0 %v674, 64
    %v678 = vpop.permute.xlu0 %677
    %v680 = vmul.f32 %v671, %v678
    %682 = vrot.lane.b32.xlu0 %v680, 64
    %v683 = vpop.permute.xlu0 %682
    %v685 = vadd.f32 %v675, %v683
    %v686 = vtanh.pop %v685
    %688 = vrot.lane.b32.xlu0 %v686, 64
    %v689 = vpop.permute.xlu0 %688
    %v691 = vmul.f32 %v673, %v689
    %s692 = scalar_lea.vmem [#allocation3], 24
    %693 = vst.msk [vmem:[%s692] sm:$0xff] %vm81, %v691
    %s694 = scalar_lea.vmem [#allocation3], 32
    %695 = vst.msk [vmem:[%s694] sm:$0xff] %vm349, %v691
    %s696 = smul.u32 4, 2
    %s697 = smul.addr %s696, 8
    %s698 = scalar_lea.vmem [#allocation2], %s697
    %v699 = vld [vmem:[%s698] sm:$0xff]
    %v700 = vld [vmem:[%s698 + $0x8] sm:$0xff]
    %v702 = vsel %vm240, %v691, 0
    %704 = vmatprep.subr.mxu0 %v38
    %705 = vmatpush1.msra.mxu0 %v37
    %706 = vmatprep.subr.mxu0 %v40
    %707 = vmatpush1.msra.mxu0 %v39
    %708 = vmatprep.subr.mxu0 %v42
    %709 = vmatpush1.msra.mxu0 %v41
    %710 = vmatprep.subr.mxu0 %v44
    %711 = vmatpush1.msra.mxu0 %v43
    %712 = vmatprep.subr.mxu0 %v46
    %713 = vmatpush1.msra.mxu0 %v45
    %714 = vmatprep.subr.mxu0 %v48
    %715 = vmatpush1.msra.mxu0 %v47
    %716 = vmatprep.subr.mxu0 %v50
    %717 = vmatpush1.msra.mxu0 %v49
    %718 = vmatprep.subr.mxu0 %v52
    %719 = vmatpush1.msra.mxu0 %v51
    %720 = vmatprep.subr.mxu0 0.0
    %721 = vmatpush1.msra.mxu0 0.0
    %722 = vmatprep.subr.mxu0 0.0
    %723 = vmatpush1.msra.mxu0 0.0
    %724 = vmatprep.subr.mxu0 0.0
    %725 = vmatpush1.msra.mxu0 0.0
    %726 = vmatprep.subr.mxu0 0.0
    %727 = vmatpush1.msra.mxu0 0.0
    %728 = vmatprep.subr.mxu0 0.0
    %729 = vmatpush1.msra.mxu0 0.0
    %730 = vmatprep.subr.mxu0 0.0
    %731 = vmatpush1.msra.mxu0 0.0
    %732 = vmatprep.subr.mxu0 0.0
    %733 = vmatpush1.msra.mxu0 0.0
    %734 = vmatprep.subr.mxu0 0.0
    %735 = vmatpush1.msra.mxu0 0.0
    %736 = vmatprep.subr.mxu0 0.0
    %737 = vmatpush1.msra.mxu0 0.0
    %738 = vmatprep.subr.mxu0 0.0
    %739 = vmatpush1.msra.mxu0 0.0
    %740 = vmatprep.subr.mxu0 0.0
    %741 = vmatpush1.msra.mxu0 0.0
    %742 = vmatprep.subr.mxu0 0.0
    %743 = vmatpush1.msra.mxu0 0.0
    %744 = vmatprep.subr.mxu0 0.0
    %745 = vmatpush1.msra.mxu0 0.0
    %746 = vmatprep.subr.mxu0 0.0
    %747 = vmatpush1.msra.mxu0 0.0
    %748 = vmatprep.subr.mxu0 0.0
    %749 = vmatpush1.msra.mxu0 0.0
    %750 = vmatprep.subr.mxu0 0.0
    %751 = vmatpush1.msra.mxu0 0.0
    %752 = vmatprep.subr.mxu0 0.0
    %753 = vmatpush1.msra.mxu0 0.0
    %754 = vmatprep.subr.mxu0 0.0
    %755 = vmatpush1.msra.mxu0 0.0
    %756 = vmatprep.subr.mxu0 0.0
    %757 = vmatpush1.msra.mxu0 0.0
    %758 = vmatprep.subr.mxu0 0.0
    %759 = vmatpush1.msra.mxu0 0.0
    %760 = vmatprep.subr.mxu0 0.0
    %761 = vmatpush1.msra.mxu0 0.0
    %762 = vmatprep.subr.mxu0 0.0
    %763 = vmatpush1.msra.mxu0 0.0
    %764 = vmatprep.subr.mxu0 0.0
    %765 = vmatpush1.msra.mxu0 0.0
    %766 = vmatprep.subr.mxu0 0.0
    %767 = vmatpush1.msra.mxu0 0.0
    %768 = vmatprep.mubr.f32.mxu0 0.0
    %769 = vmatmul.mubr.f32.gmra.mrb[0].mxu0 %v702
    %v770 = vpop.f32.mrb[0].mxu0
    %v771 = vadd.f32 0.0, %v770
    %v772 = vpop.f32.mrb[0].mxu0
    %v773 = vadd.f32 0.0, %v772
    %774 = vdwg.mxu0
    %v775 = vadd.f32 %v699, %v771
    %v776 = vadd.f32 %v700, %v773
    %v777 = vxor.u32 %v775, 2147483648
    %v778 = vxor.u32 %v776, 2147483648
    %v779 = vmul.f32 %v777, 1.442695
    %v780 = vpow.pop %v779
    %v781 = vmul.f32 %v778, 1.442695
    %v782 = vpow.pop %v781
    %v783 = vadd.f32 %v780, 1.0
    %v784 = vadd.f32 %v782, 1.0
    %v785 = vrcp.pop %v783
    %v786 = vmul.f32 1.0, %v785
    %v787 = vrcp.pop %v784
    %v788 = vmul.f32 1.0, %v787
    %v789 = vtanh.pop %v776
    %v790 = vmul.f32 %v786, %v685
    %792 = vrot.lane.b32.xlu0 %v789, 64
    %v793 = vpop.permute.xlu0 %792
    %v795 = vmul.f32 %v786, %v793
    %797 = vrot.lane.b32.xlu0 %v795, 64
    %v798 = vpop.permute.xlu0 %797
    %v800 = vadd.f32 %v790, %v798
    %v801 = vtanh.pop %v800
    %803 = vrot.lane.b32.xlu0 %v801, 64
    %v804 = vpop.permute.xlu0 %803
    %v806 = vmul.f32 %v788, %v804
    %807 = vst.msk [vmem:[%s694] sm:$0xff] %vm81, %v806
    %808 = vst.msk [vmem:[%s692] sm:$0xff] %vm349, %v806
    %s809 = smul.u32 5, 2
    %s810 = smul.addr %s809, 8
    %s811 = scalar_lea.vmem [#allocation2], %s810
    %v812 = vld [vmem:[%s811] sm:$0xff]
    %v813 = vld [vmem:[%s811 + $0x8] sm:$0xff]
    %v815 = vsel %vm240, %v806, 0
    %817 = vmatprep.subr.mxu0 %v38
    %818 = vmatpush1.msra.mxu0 %v37
    %819 = vmatprep.subr.mxu0 %v40
    %820 = vmatpush1.msra.mxu0 %v39
    %821 = vmatprep.subr.mxu0 %v42
    %822 = vmatpush1.msra.mxu0 %v41
    %823 = vmatprep.subr.mxu0 %v44
    %824 = vmatpush1.msra.mxu0 %v43
    %825 = vmatprep.subr.mxu0 %v46
    %826 = vmatpush1.msra.mxu0 %v45
    %827 = vmatprep.subr.mxu0 %v48
    %828 = vmatpush1.msra.mxu0 %v47
    %829 = vmatprep.subr.mxu0 %v50
    %830 = vmatpush1.msra.mxu0 %v49
    %831 = vmatprep.subr.mxu0 %v52
    %832 = vmatpush1.msra.mxu0 %v51
    %833 = vmatprep.subr.mxu0 0.0
    %834 = vmatpush1.msra.mxu0 0.0
    %835 = vmatprep.subr.mxu0 0.0
    %836 = vmatpush1.msra.mxu0 0.0
    %837 = vmatprep.subr.mxu0 0.0
    %838 = vmatpush1.msra.mxu0 0.0
    %839 = vmatprep.subr.mxu0 0.0
    %840 = vmatpush1.msra.mxu0 0.0
    %841 = vmatprep.subr.mxu0 0.0
    %842 = vmatpush1.msra.mxu0 0.0
    %843 = vmatprep.subr.mxu0 0.0
    %844 = vmatpush1.msra.mxu0 0.0
    %845 = vmatprep.subr.mxu0 0.0
    %846 = vmatpush1.msra.mxu0 0.0
    %847 = vmatprep.subr.mxu0 0.0
    %848 = vmatpush1.msra.mxu0 0.0
    %849 = vmatprep.subr.mxu0 0.0
    %850 = vmatpush1.msra.mxu0 0.0
    %851 = vmatprep.subr.mxu0 0.0
    %852 = vmatpush1.msra.mxu0 0.0
    %853 = vmatprep.subr.mxu0 0.0
    %854 = vmatpush1.msra.mxu0 0.0
    %855 = vmatprep.subr.mxu0 0.0
    %856 = vmatpush1.msra.mxu0 0.0
    %857 = vmatprep.subr.mxu0 0.0
    %858 = vmatpush1.msra.mxu0 0.0
    %859 = vmatprep.subr.mxu0 0.0
    %860 = vmatpush1.msra.mxu0 0.0
    %861 = vmatprep.subr.mxu0 0.0
    %862 = vmatpush1.msra.mxu0 0.0
    %863 = vmatprep.subr.mxu0 0.0
    %864 = vmatpush1.msra.mxu0 0.0
    %865 = vmatprep.subr.mxu0 0.0
    %866 = vmatpush1.msra.mxu0 0.0
    %867 = vmatprep.subr.mxu0 0.0
    %868 = vmatpush1.msra.mxu0 0.0
    %869 = vmatprep.subr.mxu0 0.0
    %870 = vmatpush1.msra.mxu0 0.0
    %871 = vmatprep.subr.mxu0 0.0
    %872 = vmatpush1.msra.mxu0 0.0
    %873 = vmatprep.subr.mxu0 0.0
    %874 = vmatpush1.msra.mxu0 0.0
    %875 = vmatprep.subr.mxu0 0.0
    %876 = vmatpush1.msra.mxu0 0.0
    %877 = vmatprep.subr.mxu0 0.0
    %878 = vmatpush1.msra.mxu0 0.0
    %879 = vmatprep.subr.mxu0 0.0
    %880 = vmatpush1.msra.mxu0 0.0
    %881 = vmatprep.mubr.f32.mxu0 0.0
    %882 = vmatmul.mubr.f32.gmra.mrb[0].mxu0 %v815
    %v883 = vpop.f32.mrb[0].mxu0
    %v884 = vadd.f32 0.0, %v883
    %v885 = vpop.f32.mrb[0].mxu0
    %v886 = vadd.f32 0.0, %v885
    %887 = vdwg.mxu0
    %v888 = vadd.f32 %v812, %v884
    %v889 = vadd.f32 %v813, %v886
    %v890 = vxor.u32 %v888, 2147483648
    %v891 = vxor.u32 %v889, 2147483648
    %v892 = vmul.f32 %v890, 1.442695
    %v893 = vpow.pop %v892
    %v894 = vmul.f32 %v891, 1.442695
    %v895 = vpow.pop %v894
    %v896 = vadd.f32 %v893, 1.0
    %v897 = vadd.f32 %v895, 1.0
    %v898 = vrcp.pop %v896
    %v899 = vmul.f32 1.0, %v898
    %v900 = vrcp.pop %v897
    %v901 = vmul.f32 1.0, %v900
    %v902 = vtanh.pop %v889
    %v903 = vmul.f32 %v899, %v800
    %905 = vrot.lane.b32.xlu0 %v902, 64
    %v906 = vpop.permute.xlu0 %905
    %v908 = vmul.f32 %v899, %v906
    %910 = vrot.lane.b32.xlu0 %v908, 64
    %v911 = vpop.permute.xlu0 %910
    %v913 = vadd.f32 %v903, %v911
    %v914 = vtanh.pop %v913
    %916 = vrot.lane.b32.xlu0 %v914, 64
    %v917 = vpop.permute.xlu0 %916
    %v919 = vmul.f32 %v901, %v917
    %920 = vst.msk [vmem:[%s579] sm:$0xff] %vm81, %v919
    %921 = vst.msk [vmem:[%s577] sm:$0xff] %vm349, %v919
    %s922 = smul.u32 6, 2
    %s923 = smul.addr %s922, 8
    %s924 = scalar_lea.vmem [#allocation2], %s923
    %v925 = vld [vmem:[%s924] sm:$0xff]
    %v926 = vld [vmem:[%s924 + $0x8] sm:$0xff]
    %v928 = vsel %vm240, %v919, 0
    %930 = vmatprep.subr.mxu0 %v38
    %931 = vmatpush1.msra.mxu0 %v37
    %932 = vmatprep.subr.mxu0 %v40
    %933 = vmatpush1.msra.mxu0 %v39
    %934 = vmatprep.subr.mxu0 %v42
    %935 = vmatpush1.msra.mxu0 %v41
    %936 = vmatprep.subr.mxu0 %v44
    %937 = vmatpush1.msra.mxu0 %v43
    %938 = vmatprep.subr.mxu0 %v46
    %939 = vmatpush1.msra.mxu0 %v45
    %940 = vmatprep.subr.mxu0 %v48
    %941 = vmatpush1.msra.mxu0 %v47
    %942 = vmatprep.subr.mxu0 %v50
    %943 = vmatpush1.msra.mxu0 %v49
    %944 = vmatprep.subr.mxu0 %v52
    %945 = vmatpush1.msra.mxu0 %v51
    %946 = vmatprep.subr.mxu0 0.0
    %947 = vmatpush1.msra.mxu0 0.0
    %948 = vmatprep.subr.mxu0 0.0
    %949 = vmatpush1.msra.mxu0 0.0
    %950 = vmatprep.subr.mxu0 0.0
    %951 = vmatpush1.msra.mxu0 0.0
    %952 = vmatprep.subr.mxu0 0.0
    %953 = vmatpush1.msra.mxu0 0.0
    %954 = vmatprep.subr.mxu0 0.0
    %955 = vmatpush1.msra.mxu0 0.0
    %956 = vmatprep.subr.mxu0 0.0
    %957 = vmatpush1.msra.mxu0 0.0
    %958 = vmatprep.subr.mxu0 0.0
    %959 = vmatpush1.msra.mxu0 0.0
    %960 = vmatprep.subr.mxu0 0.0
    %961 = vmatpush1.msra.mxu0 0.0
    %962 = vmatprep.subr.mxu0 0.0
    %963 = vmatpush1.msra.mxu0 0.0
    %964 = vmatprep.subr.mxu0 0.0
    %965 = vmatpush1.msra.mxu0 0.0
    %966 = vmatprep.subr.mxu0 0.0
    %967 = vmatpush1.msra.mxu0 0.0
    %968 = vmatprep.subr.mxu0 0.0
    %969 = vmatpush1.msra.mxu0 0.0
    %970 = vmatprep.subr.mxu0 0.0
    %971 = vmatpush1.msra.mxu0 0.0
    %972 = vmatprep.subr.mxu0 0.0
    %973 = vmatpush1.msra.mxu0 0.0
    %974 = vmatprep.subr.mxu0 0.0
    %975 = vmatpush1.msra.mxu0 0.0
    %976 = vmatprep.subr.mxu0 0.0
    %977 = vmatpush1.msra.mxu0 0.0
    %978 = vmatprep.subr.mxu0 0.0
    %979 = vmatpush1.msra.mxu0 0.0
    %980 = vmatprep.subr.mxu0 0.0
    %981 = vmatpush1.msra.mxu0 0.0
    %982 = vmatprep.subr.mxu0 0.0
    %983 = vmatpush1.msra.mxu0 0.0
    %984 = vmatprep.subr.mxu0 0.0
    %985 = vmatpush1.msra.mxu0 0.0
    %986 = vmatprep.subr.mxu0 0.0
    %987 = vmatpush1.msra.mxu0 0.0
    %988 = vmatprep.subr.mxu0 0.0
    %989 = vmatpush1.msra.mxu0 0.0
    %990 = vmatprep.subr.mxu0 0.0
    %991 = vmatpush1.msra.mxu0 0.0
    %992 = vmatprep.subr.mxu0 0.0
    %993 = vmatpush1.msra.mxu0 0.0
    %994 = vmatprep.mubr.f32.mxu0 0.0
    %995 = vmatmul.mubr.f32.gmra.mrb[0].mxu0 %v928
    %v996 = vpop.f32.mrb[0].mxu0
    %v997 = vadd.f32 0.0, %v996
    %v998 = vpop.f32.mrb[0].mxu0
    %v999 = vadd.f32 0.0, %v998
    %1000 = vdwg.mxu0
    %v1001 = vadd.f32 %v925, %v997
    %v1002 = vadd.f32 %v926, %v999
    %v1003 = vxor.u32 %v1001, 2147483648
    %v1004 = vxor.u32 %v1002, 2147483648
    %v1005 = vmul.f32 %v1003, 1.442695
    %v1006 = vpow.pop %v1005
    %v1007 = vmul.f32 %v1004, 1.442695
    %v1008 = vpow.pop %v1007
    %v1009 = vadd.f32 %v1006, 1.0
    %v1010 = vadd.f32 %v1008, 1.0
    %v1011 = vrcp.pop %v1009
    %v1012 = vmul.f32 1.0, %v1011
    %v1013 = vrcp.pop %v1010
    %v1014 = vmul.f32 1.0, %v1013
    %v1015 = vtanh.pop %v1002
    %v1016 = vmul.f32 %v1012, %v913
    %1018 = vrot.lane.b32.xlu0 %v1015, 64
    %v1019 = vpop.permute.xlu0 %1018
    %v1021 = vmul.f32 %v1012, %v1019
    %1023 = vrot.lane.b32.xlu0 %v1021, 64
    %v1024 = vpop.permute.xlu0 %1023
    %v1026 = vadd.f32 %v1016, %v1024
    %v1027 = vtanh.pop %v1026
    %1029 = vrot.lane.b32.xlu0 %v1027, 64
    %v1030 = vpop.permute.xlu0 %1029
    %v1032 = vmul.f32 %v1014, %v1030
    %1033 = vst.msk [vmem:[%s464] sm:$0xff] %vm81, %v1032
    %1034 = vst.msk [vmem:[%s462] sm:$0xff] %vm349, %v1032
    %s1035 = smul.u32 7, 2
    %s1036 = smul.addr %s1035, 8
    %s1037 = scalar_lea.vmem [#allocation2], %s1036
    %v1038 = vld [vmem:[%s1037] sm:$0xff]
    %v1039 = vld [vmem:[%s1037 + $0x8] sm:$0xff]
    %v1041 = vsel %vm240, %v1032, 0
    %1043 = vmatprep.subr.mxu0 %v38
    %1044 = vmatpush1.msra.mxu0 %v37
    %1045 = vmatprep.subr.mxu0 %v40
    %1046 = vmatpush1.msra.mxu0 %v39
    %1047 = vmatprep.subr.mxu0 %v42
    %1048 = vmatpush1.msra.mxu0 %v41
    %1049 = vmatprep.subr.mxu0 %v44
    %1050 = vmatpush1.msra.mxu0 %v43
    %1051 = vmatprep.subr.mxu0 %v46
    %1052 = vmatpush1.msra.mxu0 %v45
    %1053 = vmatprep.subr.mxu0 %v48
    %1054 = vmatpush1.msra.mxu0 %v47
    %1055 = vmatprep.subr.mxu0 %v50
    %1056 = vmatpush1.msra.mxu0 %v49
    %1057 = vmatprep.subr.mxu0 %v52
    %1058 = vmatpush1.msra.mxu0 %v51
    %1059 = vmatprep.subr.mxu0 0.0
    %1060 = vmatpush1.msra.mxu0 0.0
    %1061 = vmatprep.subr.mxu0 0.0
    %1062 = vmatpush1.msra.mxu0 0.0
    %1063 = vmatprep.subr.mxu0 0.0
    %1064 = vmatpush1.msra.mxu0 0.0
    %1065 = vmatprep.subr.mxu0 0.0
    %1066 = vmatpush1.msra.mxu0 0.0
    %1067 = vmatprep.subr.mxu0 0.0
    %1068 = vmatpush1.msra.mxu0 0.0
    %1069 = vmatprep.subr.mxu0 0.0
    %1070 = vmatpush1.msra.mxu0 0.0
    %1071 = vmatprep.subr.mxu0 0.0
    %1072 = vmatpush1.msra.mxu0 0.0
    %1073 = vmatprep.subr.mxu0 0.0
    %1074 = vmatpush1.msra.mxu0 0.0
    %1075 = vmatprep.subr.mxu0 0.0
    %1076 = vmatpush1.msra.mxu0 0.0
    %1077 = vmatprep.subr.mxu0 0.0
    %1078 = vmatpush1.msra.mxu0 0.0
    %1079 = vmatprep.subr.mxu0 0.0
    %1080 = vmatpush1.msra.mxu0 0.0
    %1081 = vmatprep.subr.mxu0 0.0
    %1082 = vmatpush1.msra.mxu0 0.0
    %1083 = vmatprep.subr.mxu0 0.0
    %1084 = vmatpush1.msra.mxu0 0.0
    %1085 = vmatprep.subr.mxu0 0.0
    %1086 = vmatpush1.msra.mxu0 0.0
    %1087 = vmatprep.subr.mxu0 0.0
    %1088 = vmatpush1.msra.mxu0 0.0
    %1089 = vmatprep.subr.mxu0 0.0
    %1090 = vmatpush1.msra.mxu0 0.0
    %1091 = vmatprep.subr.mxu0 0.0
    %1092 = vmatpush1.msra.mxu0 0.0
    %1093 = vmatprep.subr.mxu0 0.0
    %1094 = vmatpush1.msra.mxu0 0.0
    %1095 = vmatprep.subr.mxu0 0.0
    %1096 = vmatpush1.msra.mxu0 0.0
    %1097 = vmatprep.subr.mxu0 0.0
    %1098 = vmatpush1.msra.mxu0 0.0
    %1099 = vmatprep.subr.mxu0 0.0
    %1100 = vmatpush1.msra.mxu0 0.0
    %1101 = vmatprep.subr.mxu0 0.0
    %1102 = vmatpush1.msra.mxu0 0.0
    %1103 = vmatprep.subr.mxu0 0.0
    %1104 = vmatpush1.msra.mxu0 0.0
    %1105 = vmatprep.subr.mxu0 0.0
    %1106 = vmatpush1.msra.mxu0 0.0
    %1107 = vmatprep.mubr.f32.mxu0 0.0
    %1108 = vmatmul.mubr.f32.gmra.mrb[0].mxu0 %v1041
    %v1109 = vpop.f32.mrb[0].mxu0
    %v1110 = vadd.f32 0.0, %v1109
    %v1111 = vpop.f32.mrb[0].mxu0
    %v1112 = vadd.f32 0.0, %v1111
    %1113 = vdwg.mxu0
    %v1114 = vadd.f32 %v1038, %v1110
    %v1115 = vadd.f32 %v1039, %v1112
    %v1116 = vxor.u32 %v1114, 2147483648
    %v1117 = vxor.u32 %v1115, 2147483648
    %v1118 = vmul.f32 %v1116, 1.442695
    %v1119 = vpow.pop %v1118
    %v1120 = vmul.f32 %v1117, 1.442695
    %v1121 = vpow.pop %v1120
    %v1122 = vadd.f32 %v1119, 1.0
    %v1123 = vadd.f32 %v1121, 1.0
    %v1124 = vrcp.pop %v1122
    %v1125 = vmul.f32 1.0, %v1124
    %v1126 = vrcp.pop %v1123
    %v1127 = vmul.f32 1.0, %v1126
    %v1128 = vtanh.pop %v1115
    %v1129 = vmul.f32 %v1125, %v1026
    %1131 = vrot.lane.b32.xlu0 %v1128, 64
    %v1132 = vpop.permute.xlu0 %1131
    %v1134 = vmul.f32 %v1125, %v1132
    %1136 = vrot.lane.b32.xlu0 %v1134, 64
    %v1137 = vpop.permute.xlu0 %1136
    %v1139 = vadd.f32 %v1129, %v1137
    %v1140 = vtanh.pop %v1139
    %1142 = vrot.lane.b32.xlu0 %v1140, 64
    %v1143 = vpop.permute.xlu0 %1142
    %v1145 = vmul.f32 %v1127, %v1143
    %1146 = vst.msk [vmem:[%s348] sm:$0xff] %vm81, %v1145
    %1147 = vst.msk [vmem:[#allocation3] sm:$0xff] %vm349, %v1145
    %v1148 = vld [vmem:[#allocation3] sm:$0xff]
    %v1149 = vld [vmem:[#allocation3 + $0x8] sm:$0xff]
    %v1150 = vld [vmem:[#allocation3 + $0x10] sm:$0xff]
    %v1151 = vld [vmem:[#allocation3 + $0x18] sm:$0xff]
    %v1152 = vld [vmem:[#allocation3 + $0x20] sm:$0xff]
    %v1153 = vld [vmem:[#allocation3 + $0x28] sm:$0xff]
    %v1154 = vld [vmem:[#allocation3 + $0x30] sm:$0xff]
    %v1155 = vld [vmem:[#allocation3 + $0x38] sm:$0xff]
    %v1156 = vld [vmem:[%s4] sm:$0xff]
    %v1157 = vld [vmem:[%s4 + $0x8] sm:$0xff]
    %v1158 = vld [vmem:[%s4 + $0x10] sm:$0xff]
    %v1159 = vld [vmem:[%s4 + $0x18] sm:$0xff]
    %v1160 = vld [vmem:[%s4 + $0x20] sm:$0xff]
    %v1161 = vld [vmem:[%s4 + $0x28] sm:$0xff]
    %v1162 = vld [vmem:[%s4 + $0x30] sm:$0xff]
    %v1163 = vld [vmem:[%s4 + $0x38] sm:$0xff]
    %v1164 = vld [vmem:[%s5] sm:$0x1]
    %v1166 = vlaneseq
    %v1167 = vshrl.u32 %v1166, 7
    %v1168 = vsub.s32 0, %v1167
    %v1169 = vrot.slane %v1164, %v1168
    %v1172 = vsel %vm240, %v1148, 0
    %v1175 = vsel %vm240, %v1149, 0
    %v1178 = vsel %vm240, %v1150, 0
    %v1181 = vsel %vm240, %v1151, 0
    %v1184 = vsel %vm240, %v1152, 0
    %v1187 = vsel %vm240, %v1153, 0
    %v1190 = vsel %vm240, %v1154, 0
    %v1193 = vsel %vm240, %v1155, 0
    %1195 = vmatprep.subr.mxu0 0.0
    %1196 = vmatpush1.msra.mxu0 %v1156
    %1197 = vmatprep.subr.mxu0 0.0
    %1198 = vmatpush1.msra.mxu0 %v1157
    %1199 = vmatprep.subr.mxu0 0.0
    %1200 = vmatpush1.msra.mxu0 %v1158
    %1201 = vmatprep.subr.mxu0 0.0
    %1202 = vmatpush1.msra.mxu0 %v1159
    %1203 = vmatprep.subr.mxu0 0.0
    %1204 = vmatpush1.msra.mxu0 %v1160
    %1205 = vmatprep.subr.mxu0 0.0
    %1206 = vmatpush1.msra.mxu0 %v1161
    %1207 = vmatprep.subr.mxu0 0.0
    %1208 = vmatpush1.msra.mxu0 %v1162
    %1209 = vmatprep.subr.mxu0 0.0
    %1210 = vmatpush1.msra.mxu0 %v1163
    %1211 = vmatprep.subr.mxu0 0.0
    %1212 = vmatpush1.msra.mxu0 0.0
    %1213 = vmatprep.subr.mxu0 0.0
    %1214 = vmatpush1.msra.mxu0 0.0
    %1215 = vmatprep.subr.mxu0 0.0
    %1216 = vmatpush1.msra.mxu0 0.0
    %1217 = vmatprep.subr.mxu0 0.0
    %1218 = vmatpush1.msra.mxu0 0.0
    %1219 = vmatprep.subr.mxu0 0.0
    %1220 = vmatpush1.msra.mxu0 0.0
    %1221 = vmatprep.subr.mxu0 0.0
    %1222 = vmatpush1.msra.mxu0 0.0
    %1223 = vmatprep.subr.mxu0 0.0
    %1224 = vmatpush1.msra.mxu0 0.0
    %1225 = vmatprep.subr.mxu0 0.0
    %1226 = vmatpush1.msra.mxu0 0.0
    %1227 = vmatprep.subr.mxu0 0.0
    %1228 = vmatpush1.msra.mxu0 0.0
    %1229 = vmatprep.subr.mxu0 0.0
    %1230 = vmatpush1.msra.mxu0 0.0
    %1231 = vmatprep.subr.mxu0 0.0
    %1232 = vmatpush1.msra.mxu0 0.0
    %1233 = vmatprep.subr.mxu0 0.0
    %1234 = vmatpush1.msra.mxu0 0.0
    %1235 = vmatprep.subr.mxu0 0.0
    %1236 = vmatpush1.msra.mxu0 0.0
    %1237 = vmatprep.subr.mxu0 0.0
    %1238 = vmatpush1.msra.mxu0 0.0
    %1239 = vmatprep.subr.mxu0 0.0
    %1240 = vmatpush1.msra.mxu0 0.0
    %1241 = vmatprep.subr.mxu0 0.0
    %1242 = vmatpush1.msra.mxu0 0.0
    %1243 = vmatprep.subr.mxu0 0.0
    %1244 = vmatpush1.msra.mxu0 0.0
    %1245 = vmatprep.subr.mxu0 0.0
    %1246 = vmatpush1.msra.mxu0 0.0
    %1247 = vmatprep.subr.mxu0 0.0
    %1248 = vmatpush1.msra.mxu0 0.0
    %1249 = vmatprep.subr.mxu0 0.0
    %1250 = vmatpush1.msra.mxu0 0.0
    %1251 = vmatprep.subr.mxu0 0.0
    %1252 = vmatpush1.msra.mxu0 0.0
    %1253 = vmatprep.subr.mxu0 0.0
    %1254 = vmatpush1.msra.mxu0 0.0
    %1255 = vmatprep.subr.mxu0 0.0
    %1256 = vmatpush1.msra.mxu0 0.0
    %1257 = vmatprep.subr.mxu0 0.0
    %1258 = vmatpush1.msra.mxu0 0.0
    %1259 = vmatprep.mubr.f32.mxu0 0.0
    %1260 = vmatmul.mubr.f32.gmra.mrb[0].mxu0 %v1172
    %v1261 = vpop.f32.mrb[0].mxu0
    %v1262 = vadd.f32 %v1169, %v1261
    %v1263 = vpop.f32.mrb[0].mxu0
    %1264 = vmatprep.mubr.f32.mxu0 0.0
    %1265 = vmatmul.mubr.f32.gmra.mrb[0].mxu0 %v1175
    %v1266 = vpop.f32.mrb[0].mxu0
    %v1267 = vadd.f32 %v1169, %v1266
    %v1268 = vpop.f32.mrb[0].mxu0
    %1269 = vmatprep.mubr.f32.mxu0 0.0
    %1270 = vmatmul.mubr.f32.gmra.mrb[0].mxu0 %v1178
    %v1271 = vpop.f32.mrb[0].mxu0
    %v1272 = vadd.f32 %v1169, %v1271
    %v1273 = vpop.f32.mrb[0].mxu0
    %1274 = vmatprep.mubr.f32.mxu0 0.0
    %1275 = vmatmul.mubr.f32.gmra.mrb[0].mxu0 %v1181
    %v1276 = vpop.f32.mrb[0].mxu0
    %v1277 = vadd.f32 %v1169, %v1276
    %v1278 = vpop.f32.mrb[0].mxu0
    %1279 = vmatprep.mubr.f32.mxu0 0.0
    %1280 = vmatmul.mubr.f32.gmra.mrb[0].mxu0 %v1184
    %v1281 = vpop.f32.mrb[0].mxu0
    %v1282 = vadd.f32 %v1169, %v1281
    %v1283 = vpop.f32.mrb[0].mxu0
    %1284 = vmatprep.mubr.f32.mxu0 0.0
    %1285 = vmatmul.mubr.f32.gmra.mrb[0].mxu0 %v1187
    %v1286 = vpop.f32.mrb[0].mxu0
    %v1287 = vadd.f32 %v1169, %v1286
    %v1288 = vpop.f32.mrb[0].mxu0
    %1289 = vmatprep.mubr.f32.mxu0 0.0
    %1290 = vmatmul.mubr.f32.gmra.mrb[0].mxu0 %v1190
    %v1291 = vpop.f32.mrb[0].mxu0
    %v1292 = vadd.f32 %v1169, %v1291
    %v1293 = vpop.f32.mrb[0].mxu0
    %1294 = vmatprep.mubr.f32.mxu0 0.0
    %1295 = vmatmul.mubr.f32.gmra.mrb[0].mxu0 %v1193
    %v1296 = vpop.f32.mrb[0].mxu0
    %v1297 = vadd.f32 %v1169, %v1296
    %v1298 = vpop.f32.mrb[0].mxu0
    %1299 = vdwg.mxu0
    %vm1300 = vcmask 130048
    %1301 = vst.msk [vmem:[%s6] sm:$0xff] %vm1300, %v1262
    %1302 = vst.msk [vmem:[%s6 + $0x8] sm:$0xff] %vm1300, %v1267
    %1303 = vst.msk [vmem:[%s6 + $0x10] sm:$0xff] %vm1300, %v1272
    %1304 = vst.msk [vmem:[%s6 + $0x18] sm:$0xff] %vm1300, %v1277
    %1305 = vst.msk [vmem:[%s6 + $0x20] sm:$0xff] %vm1300, %v1282
    %1306 = vst.msk [vmem:[%s6 + $0x28] sm:$0xff] %vm1300, %v1287
    %1307 = vst.msk [vmem:[%s6 + $0x30] sm:$0xff] %vm1300, %v1292
    %1308 = vst.msk [vmem:[%s6 + $0x38] sm:$0xff] %vm1300, %v1297
    // Predicated region
    $region30: #{tpu_custom_call.1} parent=1 // pred_check
      _
    $region31: #{tpu_custom_call.1} parent=1 // pred_check_branch
      %1310 = sbr.rel (0) target = $region33
    $region32: #{tpu_custom_call.1} parent=1 // pred_region
      _
    $region33: #{tpu_custom_call.1} parent=1 // pred_fallthru
      _
    // Predicated region
    $region34: #{tpu_custom_call.1} parent=1 // pred_check
      _
    $region35: #{tpu_custom_call.1} parent=1 // pred_check_branch
      %1312 = sbr.rel (0) target = $region37
    $region36: #{tpu_custom_call.1} parent=1 // pred_region
      _
    $region37: #{tpu_custom_call.1} parent=1 // pred_fallthru
      _
    %1313 = vsyncpa [#allocation5], 1

</llo_original>
